<compile_context>
chip_gen: v7x
topology: tpu7x:2x2x1
jax: 0.10.0
libtpu: 0.0.40
codegen_flags: <defaults>
</compile_context>

<pallas_src>
import jax
import jax.numpy as jnp
from jax.experimental import pallas as pl
from jax.experimental.pallas import tpu as pltpu

LATENT_DIM = 16
ATTR_NUM = 8
HIDDEN = (128, 256, 512, 2048)
LRELU_SLOPE = 0.2
BN_EPS = 0.8          # second positional arg of nn.BatchNorm1d in the reference code
FEAT_TILE = 512       # output-feature tile for the 512 -> 2048 layer


def _leaky_relu(x):
    return jnp.where(x > 0, x, LRELU_SLOPE * x)


def _bn_train(z, gamma, beta):
    """BatchNorm1d training mode with one-pass batch stats (biased variance)."""
    inv_b = jnp.float32(1.0 / z.shape[0])
    s = jnp.sum(z, axis=0, keepdims=True)
    ss = jnp.sum(z * z, axis=0, keepdims=True)
    mean = s * inv_b
    var = ss * inv_b - mean * mean
    zn = (z - mean) * jax.lax.rsqrt(var + BN_EPS)
    return zn * gamma + beta


def _stage1_kernel(labels_ref, noise_ref,
                   w1a_ref, w1b_ref, b1_ref,
                   w2_ref, b2_ref, g2_ref, be2_ref,
                   w3_ref, b3_ref, g3_ref, be3_ref,
                   h3_ref):
    """Layers 1-3 (24->128->256->512). Small weights; everything resident in VMEM.
    concat([labels, noise]) @ W1 is folded into two matmuls against a row-split W1."""
    lab = labels_ref[...].astype(jnp.bfloat16)
    noi = noise_ref[...].astype(jnp.bfloat16)

    h = (jnp.dot(lab, w1a_ref[...], preferred_element_type=jnp.float32)
         + jnp.dot(noi, w1b_ref[...], preferred_element_type=jnp.float32)
         + b1_ref[...])
    h = _leaky_relu(h)  # layer 1 has no BatchNorm

    def lin_bn_lrelu(h, w_ref, b_ref, g_ref, be_ref):
        z = jnp.dot(h.astype(jnp.bfloat16), w_ref[...],
                    preferred_element_type=jnp.float32) + b_ref[...]
        return _leaky_relu(_bn_train(z, g_ref[...], be_ref[...]))

    h = lin_bn_lrelu(h, w2_ref, b2_ref, g2_ref, be2_ref)
    h = lin_bn_lrelu(h, w3_ref, b3_ref, g3_ref, be3_ref)
    h3_ref[...] = h


def _stage2_kernel(h3_ref, w4_ref, b4_ref, g4_ref, be4_ref, out_ref):
    """Layer 4 (512 -> 2048) + tanh, tiled over output features.
    BN reduces over the batch per feature, so per-tile statistics are exact."""
    h3 = h3_ref[...].astype(jnp.bfloat16)
    z = jnp.dot(h3, w4_ref[...], preferred_element_type=jnp.float32) + b4_ref[...]
    h = _leaky_relu(_bn_train(z, g4_ref[...], be4_ref[...]))
    out_ref[...] = jnp.tanh(h)


def prepare_inference_params(params):
    """One-time prep: cast Linear weights to bf16 (bf16-native MXU, half the weight
    DMA bytes) and row-split W1 so no input concat is needed. Biases / BN affine
    params stay f32."""
    prep = {k: v for k, v in params.items() if k != "w1"}
    prep["w1a"] = params["w1"][:ATTR_NUM].astype(jnp.bfloat16)
    prep["w1b"] = params["w1"][ATTR_NUM:].astype(jnp.bfloat16)
    for layer in (2, 3, 4):
        prep[f"w{layer}"] = params[f"w{layer}"].astype(jnp.bfloat16)
    return prep


@jax.jit
def generator_forward(noise, labels, prep):
    """noise: (B, LATENT_DIM), labels: (B, ATTR_NUM) -> (B, 2048) f32."""
    B = noise.shape[0]
    vmem = pl.BlockSpec(memory_space=pltpu.MemorySpace.VMEM)

    # Stage 1: gridless; < 0.5 MiB of bf16 weights + tiny activations in VMEM.
    # NOTE: default scoped VMEM limit is ample; do not request 64 MiB (all of v7x VMEM).
    h3 = pl.pallas_call(
        _stage1_kernel,
        out_shape=jax.ShapeDtypeStruct((B, HIDDEN[2]), jnp.float32),
        in_specs=[vmem] * 13,
        out_specs=vmem,
    )(labels, noise,
      prep["w1a"], prep["w1b"], prep["b1"],
      prep["w2"], prep["b2"], prep["g2"], prep["be2"],
      prep["w3"], prep["b3"], prep["g3"], prep["be3"])

    # Stage 2: grid over output-feature tiles of the dominant layer. W4 tiles are
    # double-buffered by the Pallas pipeline (DMA overlapped with compute); the
    # "parallel" axis lets v7x's two TensorCores each take half the 2048 features.
    # h3 uses a constant block index, so it is copied in once and stays resident.
    nt = FEAT_TILE
    grid = (HIDDEN[3] // nt,)
    out = pl.pallas_call(
        _stage2_kernel,
        out_shape=jax.ShapeDtypeStruct((B, HIDDEN[3]), jnp.float32),
        grid=grid,
        in_specs=[
            pl.BlockSpec((B, HIDDEN[2]), lambda j: (0, 0)),   # h3 (resident)
            pl.BlockSpec((HIDDEN[2], nt), lambda j: (0, j)),  # W4 tile
            pl.BlockSpec((1, nt), lambda j: (0, j)),          # b4
            pl.BlockSpec((1, nt), lambda j: (0, j)),          # gamma4
            pl.BlockSpec((1, nt), lambda j: (0, j)),          # beta4
        ],
        out_specs=pl.BlockSpec((B, nt), lambda j: (0, j)),
        compiler_params=pltpu.CompilerParams(
            dimension_semantics=("parallel",)),
    )(h3, prep["w4"], prep["b4"], prep["g4"], prep["be4"])
    return out


def init_params(key):
    """Deterministic init matching weights_init_kaiming:
       Linear: kaiming_normal_(a=0, mode='fan_out') -> std = sqrt(2 / out_features), bias = 0
       BatchNorm1d: weight ~ N(1.0, 0.02), bias = 0
    Linear weights are stored transposed as (in, out), in f32 (master copies)."""
    dims = [LATENT_DIM + ATTR_NUM] + list(HIDDEN)
    params = {}
    keys = jax.random.split(key, 16)
    ki = 0
    for layer in range(1, 5):
        fan_in, fan_out = dims[layer - 1], dims[layer]
        std = (2.0 / fan_out) ** 0.5
        params[f"w{layer}"] = (
            jax.random.normal(keys[ki], (fan_in, fan_out), jnp.float32) * std
        )
        ki += 1
        params[f"b{layer}"] = jnp.zeros((1, fan_out), jnp.float32)
        if layer >= 2:  # layers 2,3,4 have BatchNorm
            params[f"g{layer}"] = (
                1.0 + 0.02 * jax.random.normal(keys[ki], (1, fan_out), jnp.float32)
            )
            ki += 1
            params[f"be{layer}"] = jnp.zeros((1, fan_out), jnp.float32)
    return params


def reference_forward(noise, labels, params):
    """Pure-JAX f32 reference (PyTorch semantics) for sanity-checking the kernels."""
    x = jnp.concatenate([labels, noise], axis=-1)
    h = x @ params["w1"] + params["b1"]
    h = jnp.where(h > 0, h, LRELU_SLOPE * h)
    for layer in (2, 3, 4):
        z = h @ params[f"w{layer}"] + params[f"b{layer}"]
        mean = jnp.mean(z, axis=0, keepdims=True)
        var = jnp.mean((z - mean) ** 2, axis=0, keepdims=True)
        zn = (z - mean) / jnp.sqrt(var + BN_EPS)
        zn = zn * params[f"g{layer}"] + params[f"be{layer}"]
        h = jnp.where(zn > 0, zn, LRELU_SLOPE * zn)
    return jnp.tanh(h)


if __name__ == "__main__":
    key = jax.random.PRNGKey(0)
    k_params, k_noise, k_labels = jax.random.split(key, 3)

    B = 8
    params = init_params(k_params)             # f32 master weights
    prep = prepare_inference_params(params)    # bf16 matmul weights, row-split W1
    noise = jax.random.normal(k_noise, (B, LATENT_DIM), jnp.float32)
    labels = jax.random.normal(k_labels, (B, ATTR_NUM), jnp.float32)

    out = generator_forward(noise, labels, prep)
    out = jax.block_until_ready(out)

    ref = reference_forward(noise, labels, params)
    assert out.shape == (B, HIDDEN[-1]), out.shape
    # bf16 matmul inputs (f32 accumulation) => loosened tolerance vs. the pure-f32 reference.
    max_err = float(jnp.max(jnp.abs(out - ref)))
    assert jnp.allclose(out, ref, atol=5e-2, rtol=5e-2), max_err

    print("KERNEL_OK")
</pallas_src>

<mosaic_0001>
module attributes {stable_mosaic.version = 11 : i64} {
  func.func @_stage2_kernel(%arg0: i32, %arg1: memref<8x512xf32, #tpu.memory_space<vmem>>, %arg2: memref<512x512xbf16, #tpu.memory_space<vmem>>, %arg3: memref<1x512xf32, #tpu.memory_space<vmem>>, %arg4: memref<1x512xf32, #tpu.memory_space<vmem>>, %arg5: memref<1x512xf32, #tpu.memory_space<vmem>>, %arg6: memref<8x512xf32, #tpu.memory_space<vmem>>) attributes {dimension_semantics = [#tpu.dimension_semantics<parallel>], iteration_bounds = array<i64: 4>, scalar_prefetch = 0 : i64, scratch_operands = 0 : i64, tpu.core_type = #tpu.core_type<tc>, window_params = [{pipeline_mode = #tpu.pipeline_mode<synchronous>, transform_indices = @transform_0, window_bounds = array<i64: 8, 512>}, {transform_indices = @transform_1, window_bounds = array<i64: 512, 512>}, {transform_indices = @transform_2, window_bounds = array<i64: 1, 512>}, {transform_indices = @transform_3, window_bounds = array<i64: 1, 512>}, {transform_indices = @transform_4, window_bounds = array<i64: 1, 512>}, {transform_indices = @transform_5, window_bounds = array<i64: 8, 512>}]} {
    %c0 = arith.constant 0 : index
    %c0_0 = arith.constant 0 : index
    %0 = vector.load %arg1[%c0, %c0_0] : memref<8x512xf32, #tpu.memory_space<vmem>>, vector<8x512xf32>
    %1 = arith.truncf %0 : vector<8x512xf32> to vector<8x512xbf16>
    %c0_1 = arith.constant 0 : index
    %c0_2 = arith.constant 0 : index
    %2 = vector.load %arg2[%c0_1, %c0_2] : memref<512x512xbf16, #tpu.memory_space<vmem>>, vector<512x512xbf16>
    %cst = arith.constant dense<0.000000e+00> : vector<8x512xf32>
    %3 = tpu.matmul %1, %2, %cst {dimension_numbers = #tpu.dot_dimension_numbers<[1], [0], [0], [1], [0, 0, 1, 1], [], []>} : vector<8x512xbf16>, vector<512x512xbf16>, vector<8x512xf32> -> vector<8x512xf32>
    %c0_3 = arith.constant 0 : index
    %c0_4 = arith.constant 0 : index
    %4 = vector.load %arg3[%c0_3, %c0_4] : memref<1x512xf32, #tpu.memory_space<vmem>>, vector<1x512xf32>
    %5 = vector.broadcast %4 : vector<1x512xf32> to vector<8x512xf32>
    %6 = arith.addf %3, %5 : vector<8x512xf32>
    %c0_5 = arith.constant 0 : index
    %c0_6 = arith.constant 0 : index
    %7 = vector.load %arg4[%c0_5, %c0_6] : memref<1x512xf32, #tpu.memory_space<vmem>>, vector<1x512xf32>
    %c0_7 = arith.constant 0 : index
    %c0_8 = arith.constant 0 : index
    %8 = vector.load %arg5[%c0_7, %c0_8] : memref<1x512xf32, #tpu.memory_space<vmem>>, vector<1x512xf32>
    %cst_9 = arith.constant dense<0.000000e+00> : vector<512xf32>
    %9 = vector.multi_reduction <add>, %6, %cst_9 [0] : vector<8x512xf32> to vector<512xf32>
    %10 = vector.shape_cast %9 : vector<512xf32> to vector<1x512xf32>
    %11 = arith.mulf %6, %6 : vector<8x512xf32>
    %cst_10 = arith.constant dense<0.000000e+00> : vector<512xf32>
    %12 = vector.multi_reduction <add>, %11, %cst_10 [0] : vector<8x512xf32> to vector<512xf32>
    %13 = vector.shape_cast %12 : vector<512xf32> to vector<1x512xf32>
    %cst_11 = arith.constant 1.250000e-01 : f32
    %14 = vector.broadcast %cst_11 : f32 to vector<1x512xf32>
    %15 = arith.mulf %10, %14 : vector<1x512xf32>
    %cst_12 = arith.constant 1.250000e-01 : f32
    %16 = vector.broadcast %cst_12 : f32 to vector<1x512xf32>
    %17 = arith.mulf %13, %16 : vector<1x512xf32>
    %18 = arith.mulf %15, %15 : vector<1x512xf32>
    %19 = arith.subf %17, %18 : vector<1x512xf32>
    %20 = vector.broadcast %15 : vector<1x512xf32> to vector<8x512xf32>
    %21 = arith.subf %6, %20 : vector<8x512xf32>
    %cst_13 = arith.constant 8.000000e-01 : f32
    %22 = vector.broadcast %cst_13 : f32 to vector<1x512xf32>
    %23 = arith.addf %19, %22 : vector<1x512xf32>
    %24 = math.rsqrt %23 : vector<1x512xf32>
    %25 = vector.broadcast %24 : vector<1x512xf32> to vector<8x512xf32>
    %26 = arith.mulf %21, %25 : vector<8x512xf32>
    %27 = vector.broadcast %7 : vector<1x512xf32> to vector<8x512xf32>
    %28 = arith.mulf %26, %27 : vector<8x512xf32>
    %29 = vector.broadcast %8 : vector<1x512xf32> to vector<8x512xf32>
    %30 = arith.addf %28, %29 : vector<8x512xf32>
    %cst_14 = arith.constant 0.000000e+00 : f32
    %31 = vector.broadcast %cst_14 : f32 to vector<8x512xf32>
    %32 = arith.cmpf ogt, %30, %31 : vector<8x512xf32>
    %cst_15 = arith.constant 2.000000e-01 : f32
    %33 = vector.broadcast %cst_15 : f32 to vector<8x512xf32>
    %34 = arith.mulf %33, %30 : vector<8x512xf32>
    %35 = arith.select %32, %30, %34 : vector<8x512xi1>, vector<8x512xf32>
    %36 = math.tanh %35 : vector<8x512xf32>
    %c0_16 = arith.constant 0 : index
    %c0_17 = arith.constant 0 : index
    %37 = vector.load %arg6[%c0_16, %c0_17] : memref<8x512xf32, #tpu.memory_space<vmem>>, vector<8x512xf32>
    tpu.vector_store %arg6[%c0_16, %c0_17], %36 {strides = array<i32>} : memref<8x512xf32, #tpu.memory_space<vmem>>, vector<8x512xf32>,
    return
  }
  func.func @transform_0(%arg0: i32) -> (i32, i32) {
    %c0_i32 = arith.constant 0 : i32
    %c0_i32_0 = arith.constant 0 : i32
    %c0_i32_1 = arith.constant 0 : i32
    return %c0_i32, %c0_i32_0 : i32, i32
  }
  func.func @transform_1(%arg0: i32) -> (i32, i32) {
    %c0_i32 = arith.constant 0 : i32
    %c0_i32_0 = arith.constant 0 : i32
    return %c0_i32, %arg0 : i32, i32
  }
  func.func @transform_2(%arg0: i32) -> (i32, i32) {
    %c0_i32 = arith.constant 0 : i32
    %c0_i32_0 = arith.constant 0 : i32
    return %c0_i32, %arg0 : i32, i32
  }
  func.func @transform_3(%arg0: i32) -> (i32, i32) {
    %c0_i32 = arith.constant 0 : i32
    %c0_i32_0 = arith.constant 0 : i32
    return %c0_i32, %arg0 : i32, i32
  }
  func.func @transform_4(%arg0: i32) -> (i32, i32) {
    %c0_i32 = arith.constant 0 : i32
    %c0_i32_0 = arith.constant 0 : i32
    return %c0_i32, %arg0 : i32, i32
  }
  func.func @transform_5(%arg0: i32) -> (i32, i32) {
    %c0_i32 = arith.constant 0 : i32
    %c0_i32_0 = arith.constant 0 : i32
    return %c0_i32, %arg0 : i32, i32
  }
}

module attributes {stable_mosaic.version = 11 : i64} {
  func.func @_stage1_kernel(%arg0: memref<8x8xf32, #tpu.memory_space<vmem>>, %arg1: memref<8x16xf32, #tpu.memory_space<vmem>>, %arg2: memref<8x128xbf16, #tpu.memory_space<vmem>>, %arg3: memref<16x128xbf16, #tpu.memory_space<vmem>>, %arg4: memref<1x128xf32, #tpu.memory_space<vmem>>, %arg5: memref<128x256xbf16, #tpu.memory_space<vmem>>, %arg6: memref<1x256xf32, #tpu.memory_space<vmem>>, %arg7: memref<1x256xf32, #tpu.memory_space<vmem>>, %arg8: memref<1x256xf32, #tpu.memory_space<vmem>>, %arg9: memref<256x512xbf16, #tpu.memory_space<vmem>>, %arg10: memref<1x512xf32, #tpu.memory_space<vmem>>, %arg11: memref<1x512xf32, #tpu.memory_space<vmem>>, %arg12: memref<1x512xf32, #tpu.memory_space<vmem>>, %arg13: memref<8x512xf32, #tpu.memory_space<vmem>>) attributes {dimension_semantics = [], scalar_prefetch = 0 : i64, scratch_operands = 0 : i64, tpu.core_type = #tpu.core_type<tc>} {
    %c0 = arith.constant 0 : index
    %c0_0 = arith.constant 0 : index
    %0 = vector.load %arg0[%c0, %c0_0] : memref<8x8xf32, #tpu.memory_space<vmem>>, vector<8x8xf32>
    %1 = arith.truncf %0 : vector<8x8xf32> to vector<8x8xbf16>
    %c0_1 = arith.constant 0 : index
    %c0_2 = arith.constant 0 : index
    %2 = vector.load %arg1[%c0_1, %c0_2] : memref<8x16xf32, #tpu.memory_space<vmem>>, vector<8x16xf32>
    %3 = arith.truncf %2 : vector<8x16xf32> to vector<8x16xbf16>
    %c0_3 = arith.constant 0 : index
    %c0_4 = arith.constant 0 : index
    %4 = vector.load %arg2[%c0_3, %c0_4] : memref<8x128xbf16, #tpu.memory_space<vmem>>, vector<8x128xbf16>
    %cst = arith.constant dense<0.000000e+00> : vector<8x128xf32>
    %5 = tpu.matmul %1, %4, %cst {dimension_numbers = #tpu.dot_dimension_numbers<[1], [0], [0], [1], [0, 0, 1, 1], [], []>} : vector<8x8xbf16>, vector<8x128xbf16>, vector<8x128xf32> -> vector<8x128xf32>
    %c0_5 = arith.constant 0 : index
    %c0_6 = arith.constant 0 : index
    %6 = vector.load %arg3[%c0_5, %c0_6] : memref<16x128xbf16, #tpu.memory_space<vmem>>, vector<16x128xbf16>
    %cst_7 = arith.constant dense<0.000000e+00> : vector<8x128xf32>
    %7 = tpu.matmul %3, %6, %cst_7 {dimension_numbers = #tpu.dot_dimension_numbers<[1], [0], [0], [1], [0, 0, 1, 1], [], []>} : vector<8x16xbf16>, vector<16x128xbf16>, vector<8x128xf32> -> vector<8x128xf32>
    %8 = arith.addf %5, %7 : vector<8x128xf32>
    %c0_8 = arith.constant 0 : index
    %c0_9 = arith.constant 0 : index
    %9 = vector.load %arg4[%c0_8, %c0_9] : memref<1x128xf32, #tpu.memory_space<vmem>>, vector<1x128xf32>
    %10 = vector.broadcast %9 : vector<1x128xf32> to vector<8x128xf32>
    %11 = arith.addf %8, %10 : vector<8x128xf32>
    %cst_10 = arith.constant 0.000000e+00 : f32
    %12 = vector.broadcast %cst_10 : f32 to vector<8x128xf32>
    %13 = arith.cmpf ogt, %11, %12 : vector<8x128xf32>
    %cst_11 = arith.constant 2.000000e-01 : f32
    %14 = vector.broadcast %cst_11 : f32 to vector<8x128xf32>
    %15 = arith.mulf %14, %11 : vector<8x128xf32>
    %16 = arith.select %13, %11, %15 : vector<8x128xi1>, vector<8x128xf32>
    %17 = arith.truncf %16 : vector<8x128xf32> to vector<8x128xbf16>
    %c0_12 = arith.constant 0 : index
    %c0_13 = arith.constant 0 : index
    %18 = vector.load %arg5[%c0_12, %c0_13] : memref<128x256xbf16, #tpu.memory_space<vmem>>, vector<128x256xbf16>
    %cst_14 = arith.constant dense<0.000000e+00> : vector<8x256xf32>
    %19 = tpu.matmul %17, %18, %cst_14 {dimension_numbers = #tpu.dot_dimension_numbers<[1], [0], [0], [1], [0, 0, 1, 1], [], []>} : vector<8x128xbf16>, vector<128x256xbf16>, vector<8x256xf32> -> vector<8x256xf32>
    %c0_15 = arith.constant 0 : index
    %c0_16 = arith.constant 0 : index
    %20 = vector.load %arg6[%c0_15, %c0_16] : memref<1x256xf32, #tpu.memory_space<vmem>>, vector<1x256xf32>
    %21 = vector.broadcast %20 : vector<1x256xf32> to vector<8x256xf32>
    %22 = arith.addf %19, %21 : vector<8x256xf32>
    %c0_17 = arith.constant 0 : index
    %c0_18 = arith.constant 0 : index
    %23 = vector.load %arg7[%c0_17, %c0_18] : memref<1x256xf32, #tpu.memory_space<vmem>>, vector<1x256xf32>
    %c0_19 = arith.constant 0 : index
    %c0_20 = arith.constant 0 : index
    %24 = vector.load %arg8[%c0_19, %c0_20] : memref<1x256xf32, #tpu.memory_space<vmem>>, vector<1x256xf32>
    %cst_21 = arith.constant dense<0.000000e+00> : vector<256xf32>
    %25 = vector.multi_reduction <add>, %22, %cst_21 [0] : vector<8x256xf32> to vector<256xf32>
    %26 = vector.shape_cast %25 : vector<256xf32> to vector<1x256xf32>
    %27 = arith.mulf %22, %22 : vector<8x256xf32>
    %cst_22 = arith.constant dense<0.000000e+00> : vector<256xf32>
    %28 = vector.multi_reduction <add>, %27, %cst_22 [0] : vector<8x256xf32> to vector<256xf32>
    %29 = vector.shape_cast %28 : vector<256xf32> to vector<1x256xf32>
    %cst_23 = arith.constant 1.250000e-01 : f32
    %30 = vector.broadcast %cst_23 : f32 to vector<1x256xf32>
    %31 = arith.mulf %26, %30 : vector<1x256xf32>
    %cst_24 = arith.constant 1.250000e-01 : f32
    %32 = vector.broadcast %cst_24 : f32 to vector<1x256xf32>
    %33 = arith.mulf %29, %32 : vector<1x256xf32>
    %34 = arith.mulf %31, %31 : vector<1x256xf32>
    %35 = arith.subf %33, %34 : vector<1x256xf32>
    %36 = vector.broadcast %31 : vector<1x256xf32> to vector<8x256xf32>
    %37 = arith.subf %22, %36 : vector<8x256xf32>
    %cst_25 = arith.constant 8.000000e-01 : f32
    %38 = vector.broadcast %cst_25 : f32 to vector<1x256xf32>
    %39 = arith.addf %35, %38 : vector<1x256xf32>
    %40 = math.rsqrt %39 : vector<1x256xf32>
    %41 = vector.broadcast %40 : vector<1x256xf32> to vector<8x256xf32>
    %42 = arith.mulf %37, %41 : vector<8x256xf32>
    %43 = vector.broadcast %23 : vector<1x256xf32> to vector<8x256xf32>
    %44 = arith.mulf %42, %43 : vector<8x256xf32>
    %45 = vector.broadcast %24 : vector<1x256xf32> to vector<8x256xf32>
    %46 = arith.addf %44, %45 : vector<8x256xf32>
    %cst_26 = arith.constant 0.000000e+00 : f32
    %47 = vector.broadcast %cst_26 : f32 to vector<8x256xf32>
    %48 = arith.cmpf ogt, %46, %47 : vector<8x256xf32>
    %cst_27 = arith.constant 2.000000e-01 : f32
    %49 = vector.broadcast %cst_27 : f32 to vector<8x256xf32>
    %50 = arith.mulf %49, %46 : vector<8x256xf32>
    %51 = arith.select %48, %46, %50 : vector<8x256xi1>, vector<8x256xf32>
    %52 = arith.truncf %51 : vector<8x256xf32> to vector<8x256xbf16>
    %c0_28 = arith.constant 0 : index
    %c0_29 = arith.constant 0 : index
    %53 = vector.load %arg9[%c0_28, %c0_29] : memref<256x512xbf16, #tpu.memory_space<vmem>>, vector<256x512xbf16>
    %cst_30 = arith.constant dense<0.000000e+00> : vector<8x512xf32>
    %54 = tpu.matmul %52, %53, %cst_30 {dimension_numbers = #tpu.dot_dimension_numbers<[1], [0], [0], [1], [0, 0, 1, 1], [], []>} : vector<8x256xbf16>, vector<256x512xbf16>, vector<8x512xf32> -> vector<8x512xf32>
    %c0_31 = arith.constant 0 : index
    %c0_32 = arith.constant 0 : index
    %55 = vector.load %arg10[%c0_31, %c0_32] : memref<1x512xf32, #tpu.memory_space<vmem>>, vector<1x512xf32>
    %56 = vector.broadcast %55 : vector<1x512xf32> to vector<8x512xf32>
    %57 = arith.addf %54, %56 : vector<8x512xf32>
    %c0_33 = arith.constant 0 : index
    %c0_34 = arith.constant 0 : index
    %58 = vector.load %arg11[%c0_33, %c0_34] : memref<1x512xf32, #tpu.memory_space<vmem>>, vector<1x512xf32>
    %c0_35 = arith.constant 0 : index
    %c0_36 = arith.constant 0 : index
    %59 = vector.load %arg12[%c0_35, %c0_36] : memref<1x512xf32, #tpu.memory_space<vmem>>, vector<1x512xf32>
    %cst_37 = arith.constant dense<0.000000e+00> : vector<512xf32>
    %60 = vector.multi_reduction <add>, %57, %cst_37 [0] : vector<8x512xf32> to vector<512xf32>
    %61 = vector.shape_cast %60 : vector<512xf32> to vector<1x512xf32>
    %62 = arith.mulf %57, %57 : vector<8x512xf32>
    %cst_38 = arith.constant dense<0.000000e+00> : vector<512xf32>
    %63 = vector.multi_reduction <add>, %62, %cst_38 [0] : vector<8x512xf32> to vector<512xf32>
    %64 = vector.shape_cast %63 : vector<512xf32> to vector<1x512xf32>
    %cst_39 = arith.constant 1.250000e-01 : f32
    %65 = vector.broadcast %cst_39 : f32 to vector<1x512xf32>
    %66 = arith.mulf %61, %65 : vector<1x512xf32>
    %cst_40 = arith.constant 1.250000e-01 : f32
    %67 = vector.broadcast %cst_40 : f32 to vector<1x512xf32>
    %68 = arith.mulf %64, %67 : vector<1x512xf32>
    %69 = arith.mulf %66, %66 : vector<1x512xf32>
    %70 = arith.subf %68, %69 : vector<1x512xf32>
    %71 = vector.broadcast %66 : vector<1x512xf32> to vector<8x512xf32>
    %72 = arith.subf %57, %71 : vector<8x512xf32>
    %cst_41 = arith.constant 8.000000e-01 : f32
    %73 = vector.broadcast %cst_41 : f32 to vector<1x512xf32>
    %74 = arith.addf %70, %73 : vector<1x512xf32>
    %75 = math.rsqrt %74 : vector<1x512xf32>
    %76 = vector.broadcast %75 : vector<1x512xf32> to vector<8x512xf32>
    %77 = arith.mulf %72, %76 : vector<8x512xf32>
    %78 = vector.broadcast %58 : vector<1x512xf32> to vector<8x512xf32>
    %79 = arith.mulf %77, %78 : vector<8x512xf32>
    %80 = vector.broadcast %59 : vector<1x512xf32> to vector<8x512xf32>
    %81 = arith.addf %79, %80 : vector<8x512xf32>
    %cst_42 = arith.constant 0.000000e+00 : f32
    %82 = vector.broadcast %cst_42 : f32 to vector<8x512xf32>
    %83 = arith.cmpf ogt, %81, %82 : vector<8x512xf32>
    %cst_43 = arith.constant 2.000000e-01 : f32
    %84 = vector.broadcast %cst_43 : f32 to vector<8x512xf32>
    %85 = arith.mulf %84, %81 : vector<8x512xf32>
    %86 = arith.select %83, %81, %85 : vector<8x512xi1>, vector<8x512xf32>
    %c0_44 = arith.constant 0 : index
    %c0_45 = arith.constant 0 : index
    %87 = vector.load %arg13[%c0_44, %c0_45] : memref<8x512xf32, #tpu.memory_space<vmem>>, vector<8x512xf32>
    tpu.vector_store %arg13[%c0_44, %c0_45], %86 {strides = array<i32>} : memref<8x512xf32, #tpu.memory_space<vmem>>, vector<8x512xf32>,
    return
  }
}

</mosaic_0001>

<llo_original>
// kernel: generator_forward.3
$region0: #{generator_forward.3}
  #allocation0 [shape = 'u32[]', space=smem, size = 0x4, offset = 0x4, fixed_abs, tag = 'smem constant byte address 0x4 - core index']
  #allocation1 [shape = 'u32[144,128]{1,0:T(1,128)}', space=vmem, size = 0x12000, scoped, tag = 'internal scratch']
  %s0 = inlined_call_operand.vmem [shape: f32[8,512], index: 0, kind: input, shape index: {}]
  %s1 = inlined_call_operand.hbm [shape: bf16[512,2048], index: 1, kind: input, shape index: {}]
  %s2 = inlined_call_operand.hbm [shape: f32[1,2048], index: 2, kind: input, shape index: {}]
  %s3 = inlined_call_operand.hbm [shape: f32[1,2048], index: 3, kind: input, shape index: {}]
  %s4 = inlined_call_operand.hbm [shape: f32[1,2048], index: 4, kind: input, shape index: {}]
  %s5 = inlined_call_operand.hbm [shape: f32[8,2048], index: 5, kind: output, shape index: {}]
  %s6 = sld [smem:[#allocation0]]
  $region69: #{generator_forward.3} parent=0
    _
  %s8 = ssub.s32 1, %s6
  %s9 = scalar_select 0, %s8, %s6
  $region1: #{generator_forward.3} parent=0
    #allocation2 [shape = 'u8[1048576]{0}', space=vmem, size = 0x100000, scoped, tag = 'input window, operand 1']
    #allocation3 [shape = 's32[2]{0}', space=sflag, size = 0x8, scoped, tag = 'scoped memory for generator_forward.3']
    #allocation4 [shape = 's32[2]{0}', space=sflag, size = 0x8, scoped, tag = 'scoped memory for generator_forward.3']
    #allocation5 [shape = 'u8[4096]{0}', space=vmem, size = 0x1000, scoped, tag = 'input window, operand 2']
    #allocation6 [shape = 's32[2]{0}', space=sflag, size = 0x8, scoped, tag = 'scoped memory for generator_forward.3']
    #allocation7 [shape = 'u8[4096]{0}', space=vmem, size = 0x1000, scoped, tag = 'input window, operand 3']
    #allocation8 [shape = 'u8[4096]{0}', space=vmem, size = 0x1000, scoped, tag = 'input window, operand 4']
    #allocation9 [shape = 's32[2]{0}', space=sflag, size = 0x8, scoped, tag = 'scoped memory for generator_forward.3']
    #allocation10 [shape = 'u8[32768]{0}', space=vmem, size = 0x8000, scoped, tag = 'output window, operand 0']
    %10 = vsyncpa [#allocation3], 0
    %s11 = scalar_lea.sflag [#allocation3], 1
    %12 = vsyncpa %s11, 0
    %13 = vsyncpa [#allocation6], 0
    %s14 = scalar_lea.sflag [#allocation6], 1
    %15 = vsyncpa %s14, 0
    %16 = vsyncpa [#allocation9], 0
    %s17 = scalar_lea.sflag [#allocation9], 1
    %18 = vsyncpa %s17, 0
    %19 = vsyncpa [#allocation4], 0
    %s20 = scalar_lea.sflag [#allocation4], 1
    %21 = vsyncpa %s20, 0
    loop: start=0, step=1, limit=6
    $region2: #{generator_forward.3} parent=1 // loop_pre_header
      _
    $region3: #{generator_forward.3} parent=1 // loop_header
      %s23 = sphi 0, %s27
      %p24 = scmp.ge.s32.totalorder %s23, 6
      %s31 = sphi 0, %s31
      %s33 = sphi 0, %s31
      %s34 = sphi 0, %s33
      %s48 = sphi 0, %s34
      %s54 = sphi 0, %s56
      %s57 = sphi 0, %s54
      %s58 = sphi 0, %s57
      %s74 = sphi 0, %s58
      %s80 = sphi 0, %s82
      %s83 = sphi 0, %s80
      %s84 = sphi 0, %s83
      %s100 = sphi 0, %s84
      %s106 = sphi 0, %s108
      %s109 = sphi 0, %s106
      %s110 = sphi 0, %s109
      %s126 = sphi 0, %s110
      %s132 = sphi 0, %s134
      %s135 = sphi 0, %s132
      %s136 = sphi 0, %s135
      %s152 = sphi 0, %s136
      %s158 = sphi 0, %s160
      %s161 = sphi 0, %s158
      %s162 = sphi 0, %s161
      %s178 = sphi 0, %s162
    $region4: #{generator_forward.3} parent=1 // loop_header_branch
      %26 = sbr.rel (%p24) target = $region8
    $region5: #{generator_forward.3} parent=1 // loop_body
      %s28 = ssub.s32 %s23, 1
      %s29 = ssub.s32 %s23, 2
      %s30 = sadd.s32 %s23, 1
      %s32 = sadd.s32 %s31, 1
      %p35 = scmp.eq.s32.totalorder %s23, 3
      %p36 = scmp.ne.s32.totalorder %s31, %s33
      %p37 = scmp.eq.s32.totalorder %s23, 0
      %p38 = por %p36, %p37
      %p39 = scmp.ne.s32.totalorder %s31, %s33
      %p40 = scmp.eq.s32.totalorder %s28, 3
      %p41 = por %p39, %p40
      %p42 = scmp.ne.s32.totalorder %s33, %s34
      %p43 = scmp.eq.s32.totalorder %s28, 0
      %p44 = por %p42, %p43
      %p45 = scmp.ne.s32.totalorder %s33, %s34
      %p46 = scmp.eq.s32.totalorder %s29, 3
      %p47 = por %p45, %p46
      %p49 = scmp.ne.s32.totalorder %s34, %s48
      %p50 = scmp.eq.s32.totalorder %s29, 0
      %p51 = por %p49, %p50
      %s52 = ssub.s32 %s23, %s30
      %p53 = scmp.eq.s32.totalorder %s52, 0
      %s55 = sadd.s32 %s54, 1
      %s56 = scalar_select %p53, %s54, %s55
      %p59 = pneg %p53
      %p60 = scmp.eq.s32.totalorder %s23, 3
      %p61 = por %p59, %p60
      %p62 = scmp.ne.s32.totalorder %s54, %s57
      %p63 = scmp.eq.s32.totalorder %s23, 0
      %p64 = por %p62, %p63
      %p65 = scmp.ne.s32.totalorder %s54, %s57
      %p66 = scmp.eq.s32.totalorder %s28, 3
      %p67 = por %p65, %p66
      %p68 = scmp.ne.s32.totalorder %s57, %s58
      %p69 = scmp.eq.s32.totalorder %s28, 0
      %p70 = por %p68, %p69
      %p71 = scmp.ne.s32.totalorder %s57, %s58
      %p72 = scmp.eq.s32.totalorder %s29, 3
      %p73 = por %p71, %p72
      %p75 = scmp.ne.s32.totalorder %s58, %s74
      %p76 = scmp.eq.s32.totalorder %s29, 0
      %p77 = por %p75, %p76
      %s78 = ssub.s32 %s23, %s30
      %p79 = scmp.eq.s32.totalorder %s78, 0
      %s81 = sadd.s32 %s80, 1
      %s82 = scalar_select %p79, %s80, %s81
      %p85 = pneg %p79
      %p86 = scmp.eq.s32.totalorder %s23, 3
      %p87 = por %p85, %p86
      %p88 = scmp.ne.s32.totalorder %s80, %s83
      %p89 = scmp.eq.s32.totalorder %s23, 0
      %p90 = por %p88, %p89
      %p91 = scmp.ne.s32.totalorder %s80, %s83
      %p92 = scmp.eq.s32.totalorder %s28, 3
      %p93 = por %p91, %p92
      %p94 = scmp.ne.s32.totalorder %s83, %s84
      %p95 = scmp.eq.s32.totalorder %s28, 0
      %p96 = por %p94, %p95
      %p97 = scmp.ne.s32.totalorder %s83, %s84
      %p98 = scmp.eq.s32.totalorder %s29, 3
      %p99 = por %p97, %p98
      %p101 = scmp.ne.s32.totalorder %s84, %s100
      %p102 = scmp.eq.s32.totalorder %s29, 0
      %p103 = por %p101, %p102
      %s104 = ssub.s32 %s23, %s30
      %p105 = scmp.eq.s32.totalorder %s104, 0
      %s107 = sadd.s32 %s106, 1
      %s108 = scalar_select %p105, %s106, %s107
      %p111 = pneg %p105
      %p112 = scmp.eq.s32.totalorder %s23, 3
      %p113 = por %p111, %p112
      %p114 = scmp.ne.s32.totalorder %s106, %s109
      %p115 = scmp.eq.s32.totalorder %s23, 0
      %p116 = por %p114, %p115
      %p117 = scmp.ne.s32.totalorder %s106, %s109
      %p118 = scmp.eq.s32.totalorder %s28, 3
      %p119 = por %p117, %p118
      %p120 = scmp.ne.s32.totalorder %s109, %s110
      %p121 = scmp.eq.s32.totalorder %s28, 0
      %p122 = por %p120, %p121
      %p123 = scmp.ne.s32.totalorder %s109, %s110
      %p124 = scmp.eq.s32.totalorder %s29, 3
      %p125 = por %p123, %p124
      %p127 = scmp.ne.s32.totalorder %s110, %s126
      %p128 = scmp.eq.s32.totalorder %s29, 0
      %p129 = por %p127, %p128
      %s130 = ssub.s32 %s23, %s30
      %p131 = scmp.eq.s32.totalorder %s130, 0
      %s133 = sadd.s32 %s132, 1
      %s134 = scalar_select %p131, %s132, %s133
      %p137 = pneg %p131
      %p138 = scmp.eq.s32.totalorder %s23, 3
      %p139 = por %p137, %p138
      %p140 = scmp.ne.s32.totalorder %s132, %s135
      %p141 = scmp.eq.s32.totalorder %s23, 0
      %p142 = por %p140, %p141
      %p143 = scmp.ne.s32.totalorder %s132, %s135
      %p144 = scmp.eq.s32.totalorder %s28, 3
      %p145 = por %p143, %p144
      %p146 = scmp.ne.s32.totalorder %s135, %s136
      %p147 = scmp.eq.s32.totalorder %s28, 0
      %p148 = por %p146, %p147
      %p149 = scmp.ne.s32.totalorder %s135, %s136
      %p150 = scmp.eq.s32.totalorder %s29, 3
      %p151 = por %p149, %p150
      %p153 = scmp.ne.s32.totalorder %s136, %s152
      %p154 = scmp.eq.s32.totalorder %s29, 0
      %p155 = por %p153, %p154
      %s156 = ssub.s32 %s23, %s30
      %p157 = scmp.eq.s32.totalorder %s156, 0
      %s159 = sadd.s32 %s158, 1
      %s160 = scalar_select %p157, %s158, %s159
      %p163 = pneg %p157
      %p164 = scmp.eq.s32.totalorder %s23, 3
      %p165 = por %p163, %p164
      %p166 = scmp.ne.s32.totalorder %s158, %s161
      %p167 = scmp.eq.s32.totalorder %s23, 0
      %p168 = por %p166, %p167
      %p169 = scmp.ne.s32.totalorder %s158, %s161
      %p170 = scmp.eq.s32.totalorder %s28, 3
      %p171 = por %p169, %p170
      %p172 = scmp.ne.s32.totalorder %s161, %s162
      %p173 = scmp.eq.s32.totalorder %s28, 0
      %p174 = por %p172, %p173
      %p175 = scmp.ne.s32.totalorder %s161, %s162
      %p176 = scmp.eq.s32.totalorder %s29, 3
      %p177 = por %p175, %p176
      %p179 = scmp.ne.s32.totalorder %s162, %s178
      %p180 = scmp.eq.s32.totalorder %s29, 0
      %p181 = por %p179, %p180
      %p182 = scmp.le.s32.totalorder 1, %s23
      %p183 = scmp.lt.s32.totalorder %s23, 5
      %p184 = pnand %p182, %p183
      %p185 = pneg %p184
      // Predicated region
      $region9: #{generator_forward.3} parent=5 // pred_check
        _
      $region10: #{generator_forward.3} parent=5 // pred_check_branch
        %187 = sbr.rel (%p184) target = $region12
      $region11: #{generator_forward.3} parent=5 // pred_region
        %s188 = ssub.s32 %s23, 1
        // Predicated region
        $region13: #{generator_forward.3} parent=11 // pred_check
          %p189 = pneg %p44
        $region14: #{generator_forward.3} parent=11 // pred_check_branch
          %191 = sbr.rel (%p189) target = $region16
        $region15: #{generator_forward.3} parent=11 // pred_region
          _
        $region16: #{generator_forward.3} parent=11 // pred_fallthru
          _
      $region12: #{generator_forward.3} parent=5 // pred_fallthru
        _
      %p192 = scmp.lt.s32.totalorder %s23, 4
      // Predicated region
      $region17: #{generator_forward.3} parent=5 // pred_check
        %p193 = pneg %p192
      $region18: #{generator_forward.3} parent=5 // pred_check_branch
        %195 = sbr.rel (%p193) target = $region20
      $region19: #{generator_forward.3} parent=5 // pred_region
        // Predicated region
        $region21: #{generator_forward.3} parent=19 // pred_check
          %p196 = pneg %p64
        $region22: #{generator_forward.3} parent=19 // pred_check_branch
          %198 = sbr.rel (%p196) target = $region24
        $region23: #{generator_forward.3} parent=19 // pred_region
          %s199 = sand.u32 %s54, 1
          %s200 = scalar_lea.sflag [#allocation3], %s199
          %s201 = sand.u32 %s54, 1
          %s202 = smul.addr %s201, 1024
          %s203 = scalar_lea.vmem [#allocation2], %s202
          %s204 = smul.u32 4, %s23
          %s206 = ssub.s32 16384, 16384
          %207 = vsyncadd %s200, %s206
          %s208 = smul.addr %s204, 64
          %s209 = scalar_lea.hbm %s1, %s208
          %s210 = sshll.u32 %s203, 4
          %s211 = int_to_ptr.vmem [resolvable:$true] %s210
          %216 = dma.hbm_to_vmem [thread:$0]  %s209, 16384, %s211, %s200, 1024, 256, 16
        $region24: #{generator_forward.3} parent=19 // pred_fallthru
          _
        // Predicated region
        $region25: #{generator_forward.3} parent=19 // pred_check
          %p217 = pneg %p90
        $region26: #{generator_forward.3} parent=19 // pred_check_branch
          %219 = sbr.rel (%p217) target = $region28
        $region27: #{generator_forward.3} parent=19 // pred_region
          %s220 = sand.u32 %s23, 1
          %s221 = scalar_lea.sflag [#allocation6], %s220
          %s222 = sand.u32 %s80, 1
          %s223 = smul.addr %s222, 4
          %s224 = scalar_lea.vmem [#allocation5], %s223
          %s225 = smul.u32 4, %s23
          %s227 = ssub.s32 64, 64
          %228 = vsyncadd %s221, %s227
          %s229 = smul.addr %s225, 16
          %s230 = scalar_lea.hbm %s2, %s229
          %s232 = sshll.u32 %s224, 4
          %s233 = int_to_ptr.vmem [resolvable:$true] %s232
          %235 = dma.hbm_to_vmem [thread:$0]  %s230, 64, %s233, %s221
        $region28: #{generator_forward.3} parent=19 // pred_fallthru
          _
        // Predicated region
        $region29: #{generator_forward.3} parent=19 // pred_check
          %p236 = pneg %p116
        $region30: #{generator_forward.3} parent=19 // pred_check_branch
          %238 = sbr.rel (%p236) target = $region32
        $region31: #{generator_forward.3} parent=19 // pred_region
          %s239 = sand.u32 %s23, 1
          %s240 = scalar_lea.sflag [#allocation6], %s239
          %s241 = sand.u32 %s106, 1
          %s242 = smul.addr %s241, 4
          %s243 = scalar_lea.vmem [#allocation7], %s242
          %s244 = smul.u32 4, %s23
          %s246 = ssub.s32 64, 64
          %247 = vsyncadd %s240, %s246
          %s248 = smul.addr %s244, 16
          %s249 = scalar_lea.hbm %s3, %s248
          %s251 = sshll.u32 %s243, 4
          %s252 = int_to_ptr.vmem [resolvable:$true] %s251
          %254 = dma.hbm_to_vmem [thread:$0]  %s249, 64, %s252, %s240
        $region32: #{generator_forward.3} parent=19 // pred_fallthru
          _
        // Predicated region
        $region33: #{generator_forward.3} parent=19 // pred_check
          %p255 = pneg %p142
        $region34: #{generator_forward.3} parent=19 // pred_check_branch
          %257 = sbr.rel (%p255) target = $region36
        $region35: #{generator_forward.3} parent=19 // pred_region
          %s258 = sand.u32 %s132, 1
          %s259 = scalar_lea.sflag [#allocation9], %s258
          %s260 = sand.u32 %s132, 1
          %s261 = smul.addr %s260, 4
          %s262 = scalar_lea.vmem [#allocation8], %s261
          %s263 = smul.u32 4, %s23
          %s265 = ssub.s32 64, 64
          %266 = vsyncadd %s259, %s265
          %s267 = smul.addr %s263, 16
          %s268 = scalar_lea.hbm %s4, %s267
          %s270 = sshll.u32 %s262, 4
          %s271 = int_to_ptr.vmem [resolvable:$true] %s270
          %273 = dma.hbm_to_vmem [thread:$0]  %s268, 64, %s271, %s259
        $region36: #{generator_forward.3} parent=19 // pred_fallthru
          _
      $region20: #{generator_forward.3} parent=5 // pred_fallthru
        _
      %p274 = scmp.le.s32.totalorder 1, %s23
      %p275 = scmp.lt.s32.totalorder %s23, 5
      %p276 = pnand %p274, %p275
      %p277 = pneg %p276
      // Predicated region
      $region37: #{generator_forward.3} parent=5 // pred_check
        _
      $region38: #{generator_forward.3} parent=5 // pred_check_branch
        %279 = sbr.rel (%p276) target = $region40
      $region39: #{generator_forward.3} parent=5 // pred_region
        %s280 = ssub.s32 %s23, 1
        %s281 = sand.u32 %s57, 1
        %s282 = scalar_lea.sflag [#allocation3], %s281
        %s283 = sand.u32 %s57, 1
        %s284 = smul.addr %s283, 1024
        %s285 = scalar_lea.vmem [#allocation2], %s284
        // Predicated region
        $region41: #{generator_forward.3} parent=39 // pred_check
          %p286 = pneg %p70
        $region42: #{generator_forward.3} parent=39 // pred_check_branch
          %288 = sbr.rel (%p286) target = $region44
        $region43: #{generator_forward.3} parent=39 // pred_region
          %289 = dma.done %s282, 16384
        $region44: #{generator_forward.3} parent=39 // pred_fallthru
          _
        %s290 = sand.u32 %s28, 1
        %s291 = scalar_lea.sflag [#allocation6], %s290
        %s292 = sand.u32 %s83, 1
        %s293 = smul.addr %s292, 4
        %s294 = scalar_lea.vmem [#allocation5], %s293
        // Predicated region
        $region45: #{generator_forward.3} parent=39 // pred_check
          %p295 = pneg %p96
        $region46: #{generator_forward.3} parent=39 // pred_check_branch
          %297 = sbr.rel (%p295) target = $region48
        $region47: #{generator_forward.3} parent=39 // pred_region
          %298 = dma.done %s291, 64
        $region48: #{generator_forward.3} parent=39 // pred_fallthru
          _
        %s299 = sand.u32 %s28, 1
        %s300 = scalar_lea.sflag [#allocation6], %s299
        %s301 = sand.u32 %s109, 1
        %s302 = smul.addr %s301, 4
        %s303 = scalar_lea.vmem [#allocation7], %s302
        // Predicated region
        $region49: #{generator_forward.3} parent=39 // pred_check
          %p304 = pneg %p122
        $region50: #{generator_forward.3} parent=39 // pred_check_branch
          %306 = sbr.rel (%p304) target = $region52
        $region51: #{generator_forward.3} parent=39 // pred_region
          %307 = dma.done %s300, 64
        $region52: #{generator_forward.3} parent=39 // pred_fallthru
          _
        %s308 = sand.u32 %s135, 1
        %s309 = scalar_lea.sflag [#allocation9], %s308
        %s310 = sand.u32 %s135, 1
        %s311 = smul.addr %s310, 4
        %s312 = scalar_lea.vmem [#allocation8], %s311
        // Predicated region
        $region53: #{generator_forward.3} parent=39 // pred_check
          %p313 = pneg %p148
        $region54: #{generator_forward.3} parent=39 // pred_check_branch
          %315 = sbr.rel (%p313) target = $region56
        $region55: #{generator_forward.3} parent=39 // pred_region
          %316 = dma.done %s309, 64
        $region56: #{generator_forward.3} parent=39 // pred_fallthru
          _
        %p317 = pneg %p44
        %p318 = pneg %p41
        %s319 = sand.u32 %s57, 1
        %s320 = scalar_lea.sflag [#allocation3], %s319
        %s321 = sand.u32 %s57, 1
        %s322 = smul.addr %s321, 1024
        %s323 = scalar_lea.vmem [#allocation2], %s322
        %p324 = pneg %p70
        %p325 = pneg %p67
        %s326 = sand.u32 %s28, 1
        %s327 = scalar_lea.sflag [#allocation6], %s326
        %s328 = sand.u32 %s83, 1
        %s329 = smul.addr %s328, 4
        %s330 = scalar_lea.vmem [#allocation5], %s329
        %p331 = pneg %p96
        %p332 = pneg %p93
        %s333 = sand.u32 %s28, 1
        %s334 = scalar_lea.sflag [#allocation6], %s333
        %s335 = sand.u32 %s109, 1
        %s336 = smul.addr %s335, 4
        %s337 = scalar_lea.vmem [#allocation7], %s336
        %p338 = pneg %p122
        %p339 = pneg %p119
        %s340 = sand.u32 %s135, 1
        %s341 = scalar_lea.sflag [#allocation9], %s340
        %s342 = sand.u32 %s135, 1
        %s343 = smul.addr %s342, 4
        %s344 = scalar_lea.vmem [#allocation8], %s343
        %p345 = pneg %p148
        %p346 = pneg %p145
        %p347 = pneg %p174
        %p348 = pneg %p171
        %s349 = sand.u32 %s161, 1
        %s350 = scalar_lea.sflag [#allocation4], %s349
        %s351 = sand.u32 %s161, 1
        %s352 = smul.addr %s351, 32
        %s353 = scalar_lea.vmem [#allocation10], %s352
        %s354 = smul.u32 4, %s28
        %s355 = smul.u32 4, %s28
        %s356 = smul.u32 4, %s28
        %s357 = smul.u32 4, %s28
        %s358 = smul.u32 4, %s28
        %v359 = vld [vmem:[%s0] sm:$0xff]
        %v360 = vld [vmem:[%s0 + $0x8] sm:$0xff]
        %v361 = vld [vmem:[%s0 + $0x10] sm:$0xff]
        %v362 = vld [vmem:[%s0 + $0x18] sm:$0xff]
        %v363 = vpack.c.bf16 %v359, %v359
        %v364 = vpack.c.bf16 %v360, %v360
        %v365 = vpack.c.bf16 %v361, %v361
        %v366 = vpack.c.bf16 %v362, %v362
        %v367 = vld [vmem:[%s285] sm:$0xff]
        %v368 = vld [vmem:[%s285 + $0x8] sm:$0xff]
        %v369 = vld [vmem:[%s285 + $0x10] sm:$0xff]
        %v370 = vld [vmem:[%s285 + $0x18] sm:$0xff]
        %v371 = vld [vmem:[%s285 + $0x20] sm:$0xff]
        %v372 = vld [vmem:[%s285 + $0x28] sm:$0xff]
        %v373 = vld [vmem:[%s285 + $0x30] sm:$0xff]
        %v374 = vld [vmem:[%s285 + $0x38] sm:$0xff]
        %v375 = vld [vmem:[%s285 + $0x40] sm:$0xff]
        %v376 = vld [vmem:[%s285 + $0x48] sm:$0xff]
        %v377 = vld [vmem:[%s285 + $0x50] sm:$0xff]
        %v378 = vld [vmem:[%s285 + $0x58] sm:$0xff]
        %v379 = vld [vmem:[%s285 + $0x60] sm:$0xff]
        %v380 = vld [vmem:[%s285 + $0x68] sm:$0xff]
        %v381 = vld [vmem:[%s285 + $0x70] sm:$0xff]
        %v382 = vld [vmem:[%s285 + $0x78] sm:$0xff]
        %v383 = vld [vmem:[%s285 + $0x80] sm:$0xff]
        %v384 = vld [vmem:[%s285 + $0x88] sm:$0xff]
        %v385 = vld [vmem:[%s285 + $0x90] sm:$0xff]
        %v386 = vld [vmem:[%s285 + $0x98] sm:$0xff]
        %v387 = vld [vmem:[%s285 + $0xa0] sm:$0xff]
        %v388 = vld [vmem:[%s285 + $0xa8] sm:$0xff]
        %v389 = vld [vmem:[%s285 + $0xb0] sm:$0xff]
        %v390 = vld [vmem:[%s285 + $0xb8] sm:$0xff]
        %v391 = vld [vmem:[%s285 + $0xc0] sm:$0xff]
        %v392 = vld [vmem:[%s285 + $0xc8] sm:$0xff]
        %v393 = vld [vmem:[%s285 + $0xd0] sm:$0xff]
        %v394 = vld [vmem:[%s285 + $0xd8] sm:$0xff]
        %v395 = vld [vmem:[%s285 + $0xe0] sm:$0xff]
        %v396 = vld [vmem:[%s285 + $0xe8] sm:$0xff]
        %v397 = vld [vmem:[%s285 + $0xf0] sm:$0xff]
        %v398 = vld [vmem:[%s285 + $0xf8] sm:$0xff]
        %v399 = vld [vmem:[%s285 + $0x100] sm:$0xff]
        %v400 = vld [vmem:[%s285 + $0x108] sm:$0xff]
        %v401 = vld [vmem:[%s285 + $0x110] sm:$0xff]
        %v402 = vld [vmem:[%s285 + $0x118] sm:$0xff]
        %v403 = vld [vmem:[%s285 + $0x120] sm:$0xff]
        %v404 = vld [vmem:[%s285 + $0x128] sm:$0xff]
        %v405 = vld [vmem:[%s285 + $0x130] sm:$0xff]
        %v406 = vld [vmem:[%s285 + $0x138] sm:$0xff]
        %v407 = vld [vmem:[%s285 + $0x140] sm:$0xff]
        %v408 = vld [vmem:[%s285 + $0x148] sm:$0xff]
        %v409 = vld [vmem:[%s285 + $0x150] sm:$0xff]
        %v410 = vld [vmem:[%s285 + $0x158] sm:$0xff]
        %v411 = vld [vmem:[%s285 + $0x160] sm:$0xff]
        %v412 = vld [vmem:[%s285 + $0x168] sm:$0xff]
        %v413 = vld [vmem:[%s285 + $0x170] sm:$0xff]
        %v414 = vld [vmem:[%s285 + $0x178] sm:$0xff]
        %v415 = vld [vmem:[%s285 + $0x180] sm:$0xff]
        %v416 = vld [vmem:[%s285 + $0x188] sm:$0xff]
        %v417 = vld [vmem:[%s285 + $0x190] sm:$0xff]
        %v418 = vld [vmem:[%s285 + $0x198] sm:$0xff]
        %v419 = vld [vmem:[%s285 + $0x1a0] sm:$0xff]
        %v420 = vld [vmem:[%s285 + $0x1a8] sm:$0xff]
        %v421 = vld [vmem:[%s285 + $0x1b0] sm:$0xff]
        %v422 = vld [vmem:[%s285 + $0x1b8] sm:$0xff]
        %v423 = vld [vmem:[%s285 + $0x1c0] sm:$0xff]
        %v424 = vld [vmem:[%s285 + $0x1c8] sm:$0xff]
        %v425 = vld [vmem:[%s285 + $0x1d0] sm:$0xff]
        %v426 = vld [vmem:[%s285 + $0x1d8] sm:$0xff]
        %v427 = vld [vmem:[%s285 + $0x1e0] sm:$0xff]
        %v428 = vld [vmem:[%s285 + $0x1e8] sm:$0xff]
        %v429 = vld [vmem:[%s285 + $0x1f0] sm:$0xff]
        %v430 = vld [vmem:[%s285 + $0x1f8] sm:$0xff]
        %v431 = vld [vmem:[%s285 + $0x200] sm:$0xff]
        %v432 = vld [vmem:[%s285 + $0x208] sm:$0xff]
        %v433 = vld [vmem:[%s285 + $0x210] sm:$0xff]
        %v434 = vld [vmem:[%s285 + $0x218] sm:$0xff]
        %v435 = vld [vmem:[%s285 + $0x220] sm:$0xff]
        %v436 = vld [vmem:[%s285 + $0x228] sm:$0xff]
        %v437 = vld [vmem:[%s285 + $0x230] sm:$0xff]
        %v438 = vld [vmem:[%s285 + $0x238] sm:$0xff]
        %v439 = vld [vmem:[%s285 + $0x240] sm:$0xff]
        %v440 = vld [vmem:[%s285 + $0x248] sm:$0xff]
        %v441 = vld [vmem:[%s285 + $0x250] sm:$0xff]
        %v442 = vld [vmem:[%s285 + $0x258] sm:$0xff]
        %v443 = vld [vmem:[%s285 + $0x260] sm:$0xff]
        %v444 = vld [vmem:[%s285 + $0x268] sm:$0xff]
        %v445 = vld [vmem:[%s285 + $0x270] sm:$0xff]
        %v446 = vld [vmem:[%s285 + $0x278] sm:$0xff]
        %v447 = vld [vmem:[%s285 + $0x280] sm:$0xff]
        %v448 = vld [vmem:[%s285 + $0x288] sm:$0xff]
        %v449 = vld [vmem:[%s285 + $0x290] sm:$0xff]
        %v450 = vld [vmem:[%s285 + $0x298] sm:$0xff]
        %v451 = vld [vmem:[%s285 + $0x2a0] sm:$0xff]
        %v452 = vld [vmem:[%s285 + $0x2a8] sm:$0xff]
        %v453 = vld [vmem:[%s285 + $0x2b0] sm:$0xff]
        %v454 = vld [vmem:[%s285 + $0x2b8] sm:$0xff]
        %v455 = vld [vmem:[%s285 + $0x2c0] sm:$0xff]
        %v456 = vld [vmem:[%s285 + $0x2c8] sm:$0xff]
        %v457 = vld [vmem:[%s285 + $0x2d0] sm:$0xff]
        %v458 = vld [vmem:[%s285 + $0x2d8] sm:$0xff]
        %v459 = vld [vmem:[%s285 + $0x2e0] sm:$0xff]
        %v460 = vld [vmem:[%s285 + $0x2e8] sm:$0xff]
        %v461 = vld [vmem:[%s285 + $0x2f0] sm:$0xff]
        %v462 = vld [vmem:[%s285 + $0x2f8] sm:$0xff]
        %v463 = vld [vmem:[%s285 + $0x300] sm:$0xff]
        %v464 = vld [vmem:[%s285 + $0x308] sm:$0xff]
        %v465 = vld [vmem:[%s285 + $0x310] sm:$0xff]
        %v466 = vld [vmem:[%s285 + $0x318] sm:$0xff]
        %v467 = vld [vmem:[%s285 + $0x320] sm:$0xff]
        %v468 = vld [vmem:[%s285 + $0x328] sm:$0xff]
        %v469 = vld [vmem:[%s285 + $0x330] sm:$0xff]
        %v470 = vld [vmem:[%s285 + $0x338] sm:$0xff]
        %v471 = vld [vmem:[%s285 + $0x340] sm:$0xff]
        %v472 = vld [vmem:[%s285 + $0x348] sm:$0xff]
        %v473 = vld [vmem:[%s285 + $0x350] sm:$0xff]
        %v474 = vld [vmem:[%s285 + $0x358] sm:$0xff]
        %v475 = vld [vmem:[%s285 + $0x360] sm:$0xff]
        %v476 = vld [vmem:[%s285 + $0x368] sm:$0xff]
        %v477 = vld [vmem:[%s285 + $0x370] sm:$0xff]
        %v478 = vld [vmem:[%s285 + $0x378] sm:$0xff]
        %v479 = vld [vmem:[%s285 + $0x380] sm:$0xff]
        %v480 = vld [vmem:[%s285 + $0x388] sm:$0xff]
        %v481 = vld [vmem:[%s285 + $0x390] sm:$0xff]
        %v482 = vld [vmem:[%s285 + $0x398] sm:$0xff]
        %v483 = vld [vmem:[%s285 + $0x3a0] sm:$0xff]
        %v484 = vld [vmem:[%s285 + $0x3a8] sm:$0xff]
        %v485 = vld [vmem:[%s285 + $0x3b0] sm:$0xff]
        %v486 = vld [vmem:[%s285 + $0x3b8] sm:$0xff]
        %v487 = vld [vmem:[%s285 + $0x3c0] sm:$0xff]
        %v488 = vld [vmem:[%s285 + $0x3c8] sm:$0xff]
        %v489 = vld [vmem:[%s285 + $0x3d0] sm:$0xff]
        %v490 = vld [vmem:[%s285 + $0x3d8] sm:$0xff]
        %v491 = vld [vmem:[%s285 + $0x3e0] sm:$0xff]
        %v492 = vld [vmem:[%s285 + $0x3e8] sm:$0xff]
        %v493 = vld [vmem:[%s285 + $0x3f0] sm:$0xff]
        %v494 = vld [vmem:[%s285 + $0x3f8] sm:$0xff]
        %v495 = vld [vmem:[%s294] sm:$0xf]
        %v497 = vlaneseq
        %v498 = vshrl.u32 %v497, 7
        %v499 = vsub.s32 0, %v498
        %v500 = vrot.slane %v495, %v499
        %v501 = vlaneseq
        %v502 = vshrl.u32 %v501, 7
        %v503 = vsub.s32 1, %v502
        %v504 = vrot.slane %v495, %v503
        %v505 = vlaneseq
        %v506 = vshrl.u32 %v505, 7
        %v507 = vsub.s32 2, %v506
        %v508 = vrot.slane %v495, %v507
        %v509 = vlaneseq
        %v510 = vshrl.u32 %v509, 7
        %v511 = vsub.s32 3, %v510
        %v512 = vrot.slane %v495, %v511
        %v645 = vunpack.c.l.b16 %v367
        %v646 = vunpack.c.h.b16 %v367
        %v647 = vunpack.c.l.b16 %v368
        %v648 = vunpack.c.h.b16 %v368
        %v649 = vunpack.c.l.b16 %v369
        %v650 = vunpack.c.h.b16 %v369
        %v651 = vunpack.c.l.b16 %v370
        %v652 = vunpack.c.h.b16 %v370
        %v653 = vunpack.c.l.b16 %v371
        %v654 = vunpack.c.h.b16 %v371
        %v655 = vunpack.c.l.b16 %v372
        %v656 = vunpack.c.h.b16 %v372
        %v657 = vunpack.c.l.b16 %v373
        %v658 = vunpack.c.h.b16 %v373
        %v659 = vunpack.c.l.b16 %v374
        %v660 = vunpack.c.h.b16 %v374
        %v661 = vunpack.c.l.b16 %v375
        %v662 = vunpack.c.h.b16 %v375
        %v663 = vunpack.c.l.b16 %v376
        %v664 = vunpack.c.h.b16 %v376
        %v665 = vunpack.c.l.b16 %v377
        %v666 = vunpack.c.h.b16 %v377
        %v667 = vunpack.c.l.b16 %v378
        %v668 = vunpack.c.h.b16 %v378
        %v669 = vunpack.c.l.b16 %v379
        %v670 = vunpack.c.h.b16 %v379
        %v671 = vunpack.c.l.b16 %v380
        %v672 = vunpack.c.h.b16 %v380
        %v673 = vunpack.c.l.b16 %v381
        %v674 = vunpack.c.h.b16 %v381
        %v675 = vunpack.c.l.b16 %v382
        %v676 = vunpack.c.h.b16 %v382
        %v677 = vunpack.c.l.b16 %v383
        %v678 = vunpack.c.h.b16 %v383
        %v679 = vunpack.c.l.b16 %v384
        %v680 = vunpack.c.h.b16 %v384
        %v681 = vunpack.c.l.b16 %v385
        %v682 = vunpack.c.h.b16 %v385
        %v683 = vunpack.c.l.b16 %v386
        %v684 = vunpack.c.h.b16 %v386
        %v685 = vunpack.c.l.b16 %v387
        %v686 = vunpack.c.h.b16 %v387
        %v687 = vunpack.c.l.b16 %v388
        %v688 = vunpack.c.h.b16 %v388
        %v689 = vunpack.c.l.b16 %v389
        %v690 = vunpack.c.h.b16 %v389
        %v691 = vunpack.c.l.b16 %v390
        %v692 = vunpack.c.h.b16 %v390
        %v693 = vunpack.c.l.b16 %v391
        %v694 = vunpack.c.h.b16 %v391
        %v695 = vunpack.c.l.b16 %v392
        %v696 = vunpack.c.h.b16 %v392
        %v697 = vunpack.c.l.b16 %v393
        %v698 = vunpack.c.h.b16 %v393
        %v699 = vunpack.c.l.b16 %v394
        %v700 = vunpack.c.h.b16 %v394
        %v701 = vunpack.c.l.b16 %v395
        %v702 = vunpack.c.h.b16 %v395
        %v703 = vunpack.c.l.b16 %v396
        %v704 = vunpack.c.h.b16 %v396
        %v705 = vunpack.c.l.b16 %v397
        %v706 = vunpack.c.h.b16 %v397
        %v707 = vunpack.c.l.b16 %v398
        %v708 = vunpack.c.h.b16 %v398
        %v709 = vunpack.c.l.b16 %v399
        %v710 = vunpack.c.h.b16 %v399
        %v711 = vunpack.c.l.b16 %v400
        %v712 = vunpack.c.h.b16 %v400
        %v713 = vunpack.c.l.b16 %v401
        %v714 = vunpack.c.h.b16 %v401
        %v715 = vunpack.c.l.b16 %v402
        %v716 = vunpack.c.h.b16 %v402
        %v717 = vunpack.c.l.b16 %v403
        %v718 = vunpack.c.h.b16 %v403
        %v719 = vunpack.c.l.b16 %v404
        %v720 = vunpack.c.h.b16 %v404
        %v721 = vunpack.c.l.b16 %v405
        %v722 = vunpack.c.h.b16 %v405
        %v723 = vunpack.c.l.b16 %v406
        %v724 = vunpack.c.h.b16 %v406
        %v725 = vunpack.c.l.b16 %v407
        %v726 = vunpack.c.h.b16 %v407
        %v727 = vunpack.c.l.b16 %v408
        %v728 = vunpack.c.h.b16 %v408
        %v729 = vunpack.c.l.b16 %v409
        %v730 = vunpack.c.h.b16 %v409
        %v731 = vunpack.c.l.b16 %v410
        %v732 = vunpack.c.h.b16 %v410
        %v733 = vunpack.c.l.b16 %v411
        %v734 = vunpack.c.h.b16 %v411
        %v735 = vunpack.c.l.b16 %v412
        %v736 = vunpack.c.h.b16 %v412
        %v737 = vunpack.c.l.b16 %v413
        %v738 = vunpack.c.h.b16 %v413
        %v739 = vunpack.c.l.b16 %v414
        %v740 = vunpack.c.h.b16 %v414
        %v741 = vunpack.c.l.b16 %v415
        %v742 = vunpack.c.h.b16 %v415
        %v743 = vunpack.c.l.b16 %v416
        %v744 = vunpack.c.h.b16 %v416
        %v745 = vunpack.c.l.b16 %v417
        %v746 = vunpack.c.h.b16 %v417
        %v747 = vunpack.c.l.b16 %v418
        %v748 = vunpack.c.h.b16 %v418
        %v749 = vunpack.c.l.b16 %v419
        %v750 = vunpack.c.h.b16 %v419
        %v751 = vunpack.c.l.b16 %v420
        %v752 = vunpack.c.h.b16 %v420
        %v753 = vunpack.c.l.b16 %v421
        %v754 = vunpack.c.h.b16 %v421
        %v755 = vunpack.c.l.b16 %v422
        %v756 = vunpack.c.h.b16 %v422
        %v757 = vunpack.c.l.b16 %v423
        %v758 = vunpack.c.h.b16 %v423
        %v759 = vunpack.c.l.b16 %v424
        %v760 = vunpack.c.h.b16 %v424
        %v761 = vunpack.c.l.b16 %v425
        %v762 = vunpack.c.h.b16 %v425
        %v763 = vunpack.c.l.b16 %v426
        %v764 = vunpack.c.h.b16 %v426
        %v765 = vunpack.c.l.b16 %v427
        %v766 = vunpack.c.h.b16 %v427
        %v767 = vunpack.c.l.b16 %v428
        %v768 = vunpack.c.h.b16 %v428
        %v769 = vunpack.c.l.b16 %v429
        %v770 = vunpack.c.h.b16 %v429
        %v771 = vunpack.c.l.b16 %v430
        %v772 = vunpack.c.h.b16 %v430
        %v773 = vunpack.c.l.b16 %v431
        %v774 = vunpack.c.h.b16 %v431
        %v775 = vunpack.c.l.b16 %v432
        %v776 = vunpack.c.h.b16 %v432
        %v777 = vunpack.c.l.b16 %v433
        %v778 = vunpack.c.h.b16 %v433
        %v779 = vunpack.c.l.b16 %v434
        %v780 = vunpack.c.h.b16 %v434
        %v781 = vunpack.c.l.b16 %v435
        %v782 = vunpack.c.h.b16 %v435
        %v783 = vunpack.c.l.b16 %v436
        %v784 = vunpack.c.h.b16 %v436
        %v785 = vunpack.c.l.b16 %v437
        %v786 = vunpack.c.h.b16 %v437
        %v787 = vunpack.c.l.b16 %v438
        %v788 = vunpack.c.h.b16 %v438
        %v789 = vunpack.c.l.b16 %v439
        %v790 = vunpack.c.h.b16 %v439
        %v791 = vunpack.c.l.b16 %v440
        %v792 = vunpack.c.h.b16 %v440
        %v793 = vunpack.c.l.b16 %v441
        %v794 = vunpack.c.h.b16 %v441
        %v795 = vunpack.c.l.b16 %v442
        %v796 = vunpack.c.h.b16 %v442
        %v797 = vunpack.c.l.b16 %v443
        %v798 = vunpack.c.h.b16 %v443
        %v799 = vunpack.c.l.b16 %v444
        %v800 = vunpack.c.h.b16 %v444
        %v801 = vunpack.c.l.b16 %v445
        %v802 = vunpack.c.h.b16 %v445
        %v803 = vunpack.c.l.b16 %v446
        %v804 = vunpack.c.h.b16 %v446
        %v805 = vunpack.c.l.b16 %v447
        %v806 = vunpack.c.h.b16 %v447
        %v807 = vunpack.c.l.b16 %v448
        %v808 = vunpack.c.h.b16 %v448
        %v809 = vunpack.c.l.b16 %v449
        %v810 = vunpack.c.h.b16 %v449
        %v811 = vunpack.c.l.b16 %v450
        %v812 = vunpack.c.h.b16 %v450
        %v813 = vunpack.c.l.b16 %v451
        %v814 = vunpack.c.h.b16 %v451
        %v815 = vunpack.c.l.b16 %v452
        %v816 = vunpack.c.h.b16 %v452
        %v817 = vunpack.c.l.b16 %v453
        %v818 = vunpack.c.h.b16 %v453
        %v819 = vunpack.c.l.b16 %v454
        %v820 = vunpack.c.h.b16 %v454
        %v821 = vunpack.c.l.b16 %v455
        %v822 = vunpack.c.h.b16 %v455
        %v823 = vunpack.c.l.b16 %v456
        %v824 = vunpack.c.h.b16 %v456
        %v825 = vunpack.c.l.b16 %v457
        %v826 = vunpack.c.h.b16 %v457
        %v827 = vunpack.c.l.b16 %v458
        %v828 = vunpack.c.h.b16 %v458
        %v829 = vunpack.c.l.b16 %v459
        %v830 = vunpack.c.h.b16 %v459
        %v831 = vunpack.c.l.b16 %v460
        %v832 = vunpack.c.h.b16 %v460
        %v833 = vunpack.c.l.b16 %v461
        %v834 = vunpack.c.h.b16 %v461
        %v835 = vunpack.c.l.b16 %v462
        %v836 = vunpack.c.h.b16 %v462
        %v837 = vunpack.c.l.b16 %v463
        %v838 = vunpack.c.h.b16 %v463
        %v839 = vunpack.c.l.b16 %v464
        %v840 = vunpack.c.h.b16 %v464
        %v841 = vunpack.c.l.b16 %v465
        %v842 = vunpack.c.h.b16 %v465
        %v843 = vunpack.c.l.b16 %v466
        %v844 = vunpack.c.h.b16 %v466
        %v845 = vunpack.c.l.b16 %v467
        %v846 = vunpack.c.h.b16 %v467
        %v847 = vunpack.c.l.b16 %v468
        %v848 = vunpack.c.h.b16 %v468
        %v849 = vunpack.c.l.b16 %v469
        %v850 = vunpack.c.h.b16 %v469
        %v851 = vunpack.c.l.b16 %v470
        %v852 = vunpack.c.h.b16 %v470
        %v853 = vunpack.c.l.b16 %v471
        %v854 = vunpack.c.h.b16 %v471
        %v855 = vunpack.c.l.b16 %v472
        %v856 = vunpack.c.h.b16 %v472
        %v857 = vunpack.c.l.b16 %v473
        %v858 = vunpack.c.h.b16 %v473
        %v859 = vunpack.c.l.b16 %v474
        %v860 = vunpack.c.h.b16 %v474
        %v861 = vunpack.c.l.b16 %v475
        %v862 = vunpack.c.h.b16 %v475
        %v863 = vunpack.c.l.b16 %v476
        %v864 = vunpack.c.h.b16 %v476
        %v865 = vunpack.c.l.b16 %v477
        %v866 = vunpack.c.h.b16 %v477
        %v867 = vunpack.c.l.b16 %v478
        %v868 = vunpack.c.h.b16 %v478
        %v869 = vunpack.c.l.b16 %v479
        %v870 = vunpack.c.h.b16 %v479
        %v871 = vunpack.c.l.b16 %v480
        %v872 = vunpack.c.h.b16 %v480
        %v873 = vunpack.c.l.b16 %v481
        %v874 = vunpack.c.h.b16 %v481
        %v875 = vunpack.c.l.b16 %v482
        %v876 = vunpack.c.h.b16 %v482
        %v877 = vunpack.c.l.b16 %v483
        %v878 = vunpack.c.h.b16 %v483
        %v879 = vunpack.c.l.b16 %v484
        %v880 = vunpack.c.h.b16 %v484
        %v881 = vunpack.c.l.b16 %v485
        %v882 = vunpack.c.h.b16 %v485
        %v883 = vunpack.c.l.b16 %v486
        %v884 = vunpack.c.h.b16 %v486
        %v885 = vunpack.c.l.b16 %v487
        %v886 = vunpack.c.h.b16 %v487
        %v887 = vunpack.c.l.b16 %v488
        %v888 = vunpack.c.h.b16 %v488
        %v889 = vunpack.c.l.b16 %v489
        %v890 = vunpack.c.h.b16 %v489
        %v891 = vunpack.c.l.b16 %v490
        %v892 = vunpack.c.h.b16 %v490
        %v893 = vunpack.c.l.b16 %v491
        %v894 = vunpack.c.h.b16 %v491
        %v895 = vunpack.c.l.b16 %v492
        %v896 = vunpack.c.h.b16 %v492
        %v897 = vunpack.c.l.b16 %v493
        %v898 = vunpack.c.h.b16 %v493
        %v899 = vunpack.c.l.b16 %v494
        %v900 = vunpack.c.h.b16 %v494
        %v901 = vpack.c.b16 %v649, %v645
        %v902 = vpack.c.b16 %v650, %v646
        %v903 = vpack.c.b16 %v651, %v647
        %v904 = vpack.c.b16 %v652, %v648
        %v905 = vpack.c.b16 %v657, %v653
        %v906 = vpack.c.b16 %v658, %v654
        %v907 = vpack.c.b16 %v659, %v655
        %v908 = vpack.c.b16 %v660, %v656
        %v909 = vpack.c.b16 %v665, %v661
        %v910 = vpack.c.b16 %v666, %v662
        %v911 = vpack.c.b16 %v667, %v663
        %v912 = vpack.c.b16 %v668, %v664
        %v913 = vpack.c.b16 %v673, %v669
        %v914 = vpack.c.b16 %v674, %v670
        %v915 = vpack.c.b16 %v675, %v671
        %v916 = vpack.c.b16 %v676, %v672
        %v917 = vpack.c.b16 %v681, %v677
        %v918 = vpack.c.b16 %v682, %v678
        %v919 = vpack.c.b16 %v683, %v679
        %v920 = vpack.c.b16 %v684, %v680
        %v921 = vpack.c.b16 %v689, %v685
        %v922 = vpack.c.b16 %v690, %v686
        %v923 = vpack.c.b16 %v691, %v687
        %v924 = vpack.c.b16 %v692, %v688
        %v925 = vpack.c.b16 %v697, %v693
        %v926 = vpack.c.b16 %v698, %v694
        %v927 = vpack.c.b16 %v699, %v695
        %v928 = vpack.c.b16 %v700, %v696
        %v929 = vpack.c.b16 %v705, %v701
        %v930 = vpack.c.b16 %v706, %v702
        %v931 = vpack.c.b16 %v707, %v703
        %v932 = vpack.c.b16 %v708, %v704
        %v933 = vpack.c.b16 %v713, %v709
        %v934 = vpack.c.b16 %v714, %v710
        %v935 = vpack.c.b16 %v715, %v711
        %v936 = vpack.c.b16 %v716, %v712
        %v937 = vpack.c.b16 %v721, %v717
        %v938 = vpack.c.b16 %v722, %v718
        %v939 = vpack.c.b16 %v723, %v719
        %v940 = vpack.c.b16 %v724, %v720
        %v941 = vpack.c.b16 %v729, %v725
        %v942 = vpack.c.b16 %v730, %v726
        %v943 = vpack.c.b16 %v731, %v727
        %v944 = vpack.c.b16 %v732, %v728
        %v945 = vpack.c.b16 %v737, %v733
        %v946 = vpack.c.b16 %v738, %v734
        %v947 = vpack.c.b16 %v739, %v735
        %v948 = vpack.c.b16 %v740, %v736
        %v949 = vpack.c.b16 %v745, %v741
        %v950 = vpack.c.b16 %v746, %v742
        %v951 = vpack.c.b16 %v747, %v743
        %v952 = vpack.c.b16 %v748, %v744
        %v953 = vpack.c.b16 %v753, %v749
        %v954 = vpack.c.b16 %v754, %v750
        %v955 = vpack.c.b16 %v755, %v751
        %v956 = vpack.c.b16 %v756, %v752
        %v957 = vpack.c.b16 %v761, %v757
        %v958 = vpack.c.b16 %v762, %v758
        %v959 = vpack.c.b16 %v763, %v759
        %v960 = vpack.c.b16 %v764, %v760
        %v961 = vpack.c.b16 %v769, %v765
        %v962 = vpack.c.b16 %v770, %v766
        %v963 = vpack.c.b16 %v771, %v767
        %v964 = vpack.c.b16 %v772, %v768
        %v965 = vpack.c.b16 %v777, %v773
        %v966 = vpack.c.b16 %v778, %v774
        %v967 = vpack.c.b16 %v779, %v775
        %v968 = vpack.c.b16 %v780, %v776
        %v969 = vpack.c.b16 %v785, %v781
        %v970 = vpack.c.b16 %v786, %v782
        %v971 = vpack.c.b16 %v787, %v783
        %v972 = vpack.c.b16 %v788, %v784
        %v973 = vpack.c.b16 %v793, %v789
        %v974 = vpack.c.b16 %v794, %v790
        %v975 = vpack.c.b16 %v795, %v791
        %v976 = vpack.c.b16 %v796, %v792
        %v977 = vpack.c.b16 %v801, %v797
        %v978 = vpack.c.b16 %v802, %v798
        %v979 = vpack.c.b16 %v803, %v799
        %v980 = vpack.c.b16 %v804, %v800
        %v981 = vpack.c.b16 %v809, %v805
        %v982 = vpack.c.b16 %v810, %v806
        %v983 = vpack.c.b16 %v811, %v807
        %v984 = vpack.c.b16 %v812, %v808
        %v985 = vpack.c.b16 %v817, %v813
        %v986 = vpack.c.b16 %v818, %v814
        %v987 = vpack.c.b16 %v819, %v815
        %v988 = vpack.c.b16 %v820, %v816
        %v989 = vpack.c.b16 %v825, %v821
        %v990 = vpack.c.b16 %v826, %v822
        %v991 = vpack.c.b16 %v827, %v823
        %v992 = vpack.c.b16 %v828, %v824
        %v993 = vpack.c.b16 %v833, %v829
        %v994 = vpack.c.b16 %v834, %v830
        %v995 = vpack.c.b16 %v835, %v831
        %v996 = vpack.c.b16 %v836, %v832
        %v997 = vpack.c.b16 %v841, %v837
        %v998 = vpack.c.b16 %v842, %v838
        %v999 = vpack.c.b16 %v843, %v839
        %v1000 = vpack.c.b16 %v844, %v840
        %v1001 = vpack.c.b16 %v849, %v845
        %v1002 = vpack.c.b16 %v850, %v846
        %v1003 = vpack.c.b16 %v851, %v847
        %v1004 = vpack.c.b16 %v852, %v848
        %v1005 = vpack.c.b16 %v857, %v853
        %v1006 = vpack.c.b16 %v858, %v854
        %v1007 = vpack.c.b16 %v859, %v855
        %v1008 = vpack.c.b16 %v860, %v856
        %v1009 = vpack.c.b16 %v865, %v861
        %v1010 = vpack.c.b16 %v866, %v862
        %v1011 = vpack.c.b16 %v867, %v863
        %v1012 = vpack.c.b16 %v868, %v864
        %v1013 = vpack.c.b16 %v873, %v869
        %v1014 = vpack.c.b16 %v874, %v870
        %v1015 = vpack.c.b16 %v875, %v871
        %v1016 = vpack.c.b16 %v876, %v872
        %v1017 = vpack.c.b16 %v881, %v877
        %v1018 = vpack.c.b16 %v882, %v878
        %v1019 = vpack.c.b16 %v883, %v879
        %v1020 = vpack.c.b16 %v884, %v880
        %v1021 = vpack.c.b16 %v889, %v885
        %v1022 = vpack.c.b16 %v890, %v886
        %v1023 = vpack.c.b16 %v891, %v887
        %v1024 = vpack.c.b16 %v892, %v888
        %v1025 = vpack.c.b16 %v897, %v893
        %v1026 = vpack.c.b16 %v898, %v894
        %v1027 = vpack.c.b16 %v899, %v895
        %v1028 = vpack.c.b16 %v900, %v896
        %1157 = vmatprep.subr.bf16.mxu0 %v902
        %1158 = vmatpush1.bf16.msra.mxu0 %v901
        %1159 = vmatprep.subr.bf16.mxu0 %v906
        %1160 = vmatpush1.bf16.msra.mxu0 %v905
        %1161 = vmatprep.subr.bf16.mxu0 %v910
        %1162 = vmatpush1.bf16.msra.mxu0 %v909
        %1163 = vmatprep.subr.bf16.mxu0 %v914
        %1164 = vmatpush1.bf16.msra.mxu0 %v913
        %1165 = vmatprep.subr.bf16.mxu0 %v918
        %1166 = vmatpush1.bf16.msra.mxu0 %v917
        %1167 = vmatprep.subr.bf16.mxu0 %v922
        %1168 = vmatpush1.bf16.msra.mxu0 %v921
        %1169 = vmatprep.subr.bf16.mxu0 %v926
        %1170 = vmatpush1.bf16.msra.mxu0 %v925
        %1171 = vmatprep.subr.bf16.mxu0 %v930
        %1172 = vmatpush1.bf16.msra.mxu0 %v929
        %1173 = vmatprep.subr.bf16.mxu0 %v934
        %1174 = vmatpush1.bf16.msra.mxu0 %v933
        %1175 = vmatprep.subr.bf16.mxu0 %v938
        %1176 = vmatpush1.bf16.msra.mxu0 %v937
        %1177 = vmatprep.subr.bf16.mxu0 %v942
        %1178 = vmatpush1.bf16.msra.mxu0 %v941
        %1179 = vmatprep.subr.bf16.mxu0 %v946
        %1180 = vmatpush1.bf16.msra.mxu0 %v945
        %1181 = vmatprep.subr.bf16.mxu0 %v950
        %1182 = vmatpush1.bf16.msra.mxu0 %v949
        %1183 = vmatprep.subr.bf16.mxu0 %v954
        %1184 = vmatpush1.bf16.msra.mxu0 %v953
        %1185 = vmatprep.subr.bf16.mxu0 %v958
        %1186 = vmatpush1.bf16.msra.mxu0 %v957
        %1187 = vmatprep.subr.bf16.mxu0 %v962
        %1188 = vmatpush1.bf16.msra.mxu0 %v961
        %1189 = vmatprep.mubr.bf16.mxu0 %v364
        %1190 = vmatmul.mubr.bf16.gmra.mrb[0].mxu0 %v363
        %v1191 = vpop.f32.mrb[0].mxu0
        %v1192 = vadd.f32 %v500, %v1191
        %v1193 = vpop.f32.mrb[0].mxu0
        %v1194 = vadd.f32 %v504, %v1193
        %v1195 = vpop.f32.mrb[0].mxu0
        %v1196 = vpop.f32.mrb[0].mxu0
        %1197 = vdwg.mxu0
        %1198 = vmatprep.subr.bf16.mxu0 %v966
        %1199 = vmatpush1.bf16.msra.mxu0 %v965
        %1200 = vmatprep.subr.bf16.mxu0 %v970
        %1201 = vmatpush1.bf16.msra.mxu0 %v969
        %1202 = vmatprep.subr.bf16.mxu0 %v974
        %1203 = vmatpush1.bf16.msra.mxu0 %v973
        %1204 = vmatprep.subr.bf16.mxu0 %v978
        %1205 = vmatpush1.bf16.msra.mxu0 %v977
        %1206 = vmatprep.subr.bf16.mxu0 %v982
        %1207 = vmatpush1.bf16.msra.mxu0 %v981
        %1208 = vmatprep.subr.bf16.mxu0 %v986
        %1209 = vmatpush1.bf16.msra.mxu0 %v985
        %1210 = vmatprep.subr.bf16.mxu0 %v990
        %1211 = vmatpush1.bf16.msra.mxu0 %v989
        %1212 = vmatprep.subr.bf16.mxu0 %v994
        %1213 = vmatpush1.bf16.msra.mxu0 %v993
        %1214 = vmatprep.subr.bf16.mxu0 %v998
        %1215 = vmatpush1.bf16.msra.mxu0 %v997
        %1216 = vmatprep.subr.bf16.mxu0 %v1002
        %1217 = vmatpush1.bf16.msra.mxu0 %v1001
        %1218 = vmatprep.subr.bf16.mxu0 %v1006
        %1219 = vmatpush1.bf16.msra.mxu0 %v1005
        %1220 = vmatprep.subr.bf16.mxu0 %v1010
        %1221 = vmatpush1.bf16.msra.mxu0 %v1009
        %1222 = vmatprep.subr.bf16.mxu0 %v1014
        %1223 = vmatpush1.bf16.msra.mxu0 %v1013
        %1224 = vmatprep.subr.bf16.mxu0 %v1018
        %1225 = vmatpush1.bf16.msra.mxu0 %v1017
        %1226 = vmatprep.subr.bf16.mxu0 %v1022
        %1227 = vmatpush1.bf16.msra.mxu0 %v1021
        %1228 = vmatprep.subr.bf16.mxu0 %v1026
        %1229 = vmatpush1.bf16.msra.mxu0 %v1025
        %1230 = vmatprep.mubr.bf16.mxu0 %v366
        %1231 = vmatmul.mubr.bf16.gmra.mrb[0].mxu0 %v365
        %v1232 = vpop.f32.mrb[0].mxu0
        %v1233 = vadd.f32 %v1192, %v1232
        %v1234 = vpop.f32.mrb[0].mxu0
        %v1235 = vadd.f32 %v1194, %v1234
        %v1236 = vpop.f32.mrb[0].mxu0
        %v1237 = vpop.f32.mrb[0].mxu0
        %1238 = vdwg.mxu0
        %1239 = vmatprep.subr.bf16.mxu0 %v904
        %1240 = vmatpush1.bf16.msra.mxu0 %v903
        %1241 = vmatprep.subr.bf16.mxu0 %v908
        %1242 = vmatpush1.bf16.msra.mxu0 %v907
        %1243 = vmatprep.subr.bf16.mxu0 %v912
        %1244 = vmatpush1.bf16.msra.mxu0 %v911
        %1245 = vmatprep.subr.bf16.mxu0 %v916
        %1246 = vmatpush1.bf16.msra.mxu0 %v915
        %1247 = vmatprep.subr.bf16.mxu0 %v920
        %1248 = vmatpush1.bf16.msra.mxu0 %v919
        %1249 = vmatprep.subr.bf16.mxu0 %v924
        %1250 = vmatpush1.bf16.msra.mxu0 %v923
        %1251 = vmatprep.subr.bf16.mxu0 %v928
        %1252 = vmatpush1.bf16.msra.mxu0 %v927
        %1253 = vmatprep.subr.bf16.mxu0 %v932
        %1254 = vmatpush1.bf16.msra.mxu0 %v931
        %1255 = vmatprep.subr.bf16.mxu0 %v936
        %1256 = vmatpush1.bf16.msra.mxu0 %v935
        %1257 = vmatprep.subr.bf16.mxu0 %v940
        %1258 = vmatpush1.bf16.msra.mxu0 %v939
        %1259 = vmatprep.subr.bf16.mxu0 %v944
        %1260 = vmatpush1.bf16.msra.mxu0 %v943
        %1261 = vmatprep.subr.bf16.mxu0 %v948
        %1262 = vmatpush1.bf16.msra.mxu0 %v947
        %1263 = vmatprep.subr.bf16.mxu0 %v952
        %1264 = vmatpush1.bf16.msra.mxu0 %v951
        %1265 = vmatprep.subr.bf16.mxu0 %v956
        %1266 = vmatpush1.bf16.msra.mxu0 %v955
        %1267 = vmatprep.subr.bf16.mxu0 %v960
        %1268 = vmatpush1.bf16.msra.mxu0 %v959
        %1269 = vmatprep.subr.bf16.mxu0 %v964
        %1270 = vmatpush1.bf16.msra.mxu0 %v963
        %1271 = vmatprep.mubr.bf16.mxu0 %v364
        %1272 = vmatmul.mubr.bf16.gmra.mrb[0].mxu0 %v363
        %v1273 = vpop.f32.mrb[0].mxu0
        %v1274 = vadd.f32 %v508, %v1273
        %v1275 = vpop.f32.mrb[0].mxu0
        %v1276 = vadd.f32 %v512, %v1275
        %v1277 = vpop.f32.mrb[0].mxu0
        %v1278 = vpop.f32.mrb[0].mxu0
        %1279 = vdwg.mxu0
        %1280 = vmatprep.subr.bf16.mxu0 %v968
        %1281 = vmatpush1.bf16.msra.mxu0 %v967
        %1282 = vmatprep.subr.bf16.mxu0 %v972
        %1283 = vmatpush1.bf16.msra.mxu0 %v971
        %1284 = vmatprep.subr.bf16.mxu0 %v976
        %1285 = vmatpush1.bf16.msra.mxu0 %v975
        %1286 = vmatprep.subr.bf16.mxu0 %v980
        %1287 = vmatpush1.bf16.msra.mxu0 %v979
        %1288 = vmatprep.subr.bf16.mxu0 %v984
        %1289 = vmatpush1.bf16.msra.mxu0 %v983
        %1290 = vmatprep.subr.bf16.mxu0 %v988
        %1291 = vmatpush1.bf16.msra.mxu0 %v987
        %1292 = vmatprep.subr.bf16.mxu0 %v992
        %1293 = vmatpush1.bf16.msra.mxu0 %v991
        %1294 = vmatprep.subr.bf16.mxu0 %v996
        %1295 = vmatpush1.bf16.msra.mxu0 %v995
        %1296 = vmatprep.subr.bf16.mxu0 %v1000
        %1297 = vmatpush1.bf16.msra.mxu0 %v999
        %1298 = vmatprep.subr.bf16.mxu0 %v1004
        %1299 = vmatpush1.bf16.msra.mxu0 %v1003
        %1300 = vmatprep.subr.bf16.mxu0 %v1008
        %1301 = vmatpush1.bf16.msra.mxu0 %v1007
        %1302 = vmatprep.subr.bf16.mxu0 %v1012
        %1303 = vmatpush1.bf16.msra.mxu0 %v1011
        %1304 = vmatprep.subr.bf16.mxu0 %v1016
        %1305 = vmatpush1.bf16.msra.mxu0 %v1015
        %1306 = vmatprep.subr.bf16.mxu0 %v1020
        %1307 = vmatpush1.bf16.msra.mxu0 %v1019
        %1308 = vmatprep.subr.bf16.mxu0 %v1024
        %1309 = vmatpush1.bf16.msra.mxu0 %v1023
        %1310 = vmatprep.subr.bf16.mxu0 %v1028
        %1311 = vmatpush1.bf16.msra.mxu0 %v1027
        %1312 = vmatprep.mubr.bf16.mxu0 %v366
        %1313 = vmatmul.mubr.bf16.gmra.mrb[0].mxu0 %v365
        %v1314 = vpop.f32.mrb[0].mxu0
        %v1315 = vadd.f32 %v1274, %v1314
        %v1316 = vpop.f32.mrb[0].mxu0
        %v1317 = vadd.f32 %v1276, %v1316
        %v1318 = vpop.f32.mrb[0].mxu0
        %v1319 = vpop.f32.mrb[0].mxu0
        %1320 = vdwg.mxu0
        %v1321 = vld [vmem:[%s303] sm:$0xf]
        %v1322 = vld [vmem:[%s312] sm:$0xf]
        %v1323 = vrot.slane %v1233, 4
        %v1324 = vadd.f32 %v1233, %v1323
        %v1325 = vrot.slane %v1324, 2
        %v1326 = vadd.f32 %v1324, %v1325
        %v1327 = vrot.slane %v1326, 1
        %v1328 = vadd.f32 %v1326, %v1327
        %v1329 = vrot.slane %v1235, 4
        %v1330 = vadd.f32 %v1235, %v1329
        %v1331 = vrot.slane %v1330, 2
        %v1332 = vadd.f32 %v1330, %v1331
        %v1333 = vrot.slane %v1332, 1
        %v1334 = vadd.f32 %v1332, %v1333
        %v1335 = vrot.slane %v1315, 4
        %v1336 = vadd.f32 %v1315, %v1335
        %v1337 = vrot.slane %v1336, 2
        %v1338 = vadd.f32 %v1336, %v1337
        %v1339 = vrot.slane %v1338, 1
        %v1340 = vadd.f32 %v1338, %v1339
        %v1341 = vrot.slane %v1317, 4
        %v1342 = vadd.f32 %v1317, %v1341
        %v1343 = vrot.slane %v1342, 2
        %v1344 = vadd.f32 %v1342, %v1343
        %v1345 = vrot.slane %v1344, 1
        %v1346 = vadd.f32 %v1344, %v1345
        %v1347 = vmul.f32 %v1233, %v1233
        %v1348 = vmul.f32 %v1235, %v1235
        %v1349 = vmul.f32 %v1315, %v1315
        %v1350 = vmul.f32 %v1317, %v1317
        %v1351 = vrot.slane %v1347, 4
        %v1352 = vadd.f32 %v1347, %v1351
        %v1353 = vrot.slane %v1352, 2
        %v1354 = vadd.f32 %v1352, %v1353
        %v1355 = vrot.slane %v1354, 1
        %v1356 = vadd.f32 %v1354, %v1355
        %v1357 = vrot.slane %v1348, 4
        %v1358 = vadd.f32 %v1348, %v1357
        %v1359 = vrot.slane %v1358, 2
        %v1360 = vadd.f32 %v1358, %v1359
        %v1361 = vrot.slane %v1360, 1
        %v1362 = vadd.f32 %v1360, %v1361
        %v1363 = vrot.slane %v1349, 4
        %v1364 = vadd.f32 %v1349, %v1363
        %v1365 = vrot.slane %v1364, 2
        %v1366 = vadd.f32 %v1364, %v1365
        %v1367 = vrot.slane %v1366, 1
        %v1368 = vadd.f32 %v1366, %v1367
        %v1369 = vrot.slane %v1350, 4
        %v1370 = vadd.f32 %v1350, %v1369
        %v1371 = vrot.slane %v1370, 2
        %v1372 = vadd.f32 %v1370, %v1371
        %v1373 = vrot.slane %v1372, 1
        %v1374 = vadd.f32 %v1372, %v1373
        %v1375 = vmul.f32 %v1328, 0.125
        %v1376 = vmul.f32 %v1334, 0.125
        %v1377 = vmul.f32 %v1340, 0.125
        %v1378 = vmul.f32 %v1346, 0.125
        %v1379 = vmul.f32 %v1356, 0.125
        %v1380 = vmul.f32 %v1362, 0.125
        %v1381 = vmul.f32 %v1368, 0.125
        %v1382 = vmul.f32 %v1374, 0.125
        %v1383 = vmul.f32 %v1375, %v1375
        %v1384 = vmul.f32 %v1376, %v1376
        %v1385 = vmul.f32 %v1377, %v1377
        %v1386 = vmul.f32 %v1378, %v1378
        %v1387 = vsub.f32 %v1379, %v1383
        %v1388 = vsub.f32 %v1380, %v1384
        %v1389 = vsub.f32 %v1381, %v1385
        %v1390 = vsub.f32 %v1382, %v1386
        %v1391 = vsub.f32 %v1233, %v1375
        %v1392 = vsub.f32 %v1235, %v1376
        %v1393 = vsub.f32 %v1315, %v1377
        %v1394 = vsub.f32 %v1317, %v1378
        %v1395 = vadd.f32 %v1387, 0.8
        %v1396 = vadd.f32 %v1388, 0.8
        %v1397 = vadd.f32 %v1389, 0.8
        %v1398 = vadd.f32 %v1390, 0.8
        %v1399 = vrsqrt.pop %v1395
        %v1400 = vrsqrt.pop %v1396
        %v1401 = vrsqrt.pop %v1397
        %v1402 = vrsqrt.pop %v1398
        %v1403 = vmul.f32 %v1391, %v1399
        %v1404 = vmul.f32 %v1392, %v1400
        %v1405 = vmul.f32 %v1393, %v1401
        %v1406 = vmul.f32 %v1394, %v1402
        %v1408 = vlaneseq
        %v1409 = vshrl.u32 %v1408, 7
        %v1410 = vsub.s32 0, %v1409
        %v1411 = vrot.slane %v1321, %v1410
        %v1412 = vlaneseq
        %v1413 = vshrl.u32 %v1412, 7
        %v1414 = vsub.s32 1, %v1413
        %v1415 = vrot.slane %v1321, %v1414
        %v1416 = vlaneseq
        %v1417 = vshrl.u32 %v1416, 7
        %v1418 = vsub.s32 2, %v1417
        %v1419 = vrot.slane %v1321, %v1418
        %v1420 = vlaneseq
        %v1421 = vshrl.u32 %v1420, 7
        %v1422 = vsub.s32 3, %v1421
        %v1423 = vrot.slane %v1321, %v1422
        %v1428 = vmul.f32 %v1403, %v1411
        %v1429 = vmul.f32 %v1404, %v1415
        %v1430 = vmul.f32 %v1405, %v1419
        %v1431 = vmul.f32 %v1406, %v1423
        %v1433 = vlaneseq
        %v1434 = vshrl.u32 %v1433, 7
        %v1435 = vsub.s32 0, %v1434
        %v1436 = vrot.slane %v1322, %v1435
        %v1437 = vlaneseq
        %v1438 = vshrl.u32 %v1437, 7
        %v1439 = vsub.s32 1, %v1438
        %v1440 = vrot.slane %v1322, %v1439
        %v1441 = vlaneseq
        %v1442 = vshrl.u32 %v1441, 7
        %v1443 = vsub.s32 2, %v1442
        %v1444 = vrot.slane %v1322, %v1443
        %v1445 = vlaneseq
        %v1446 = vshrl.u32 %v1445, 7
        %v1447 = vsub.s32 3, %v1446
        %v1448 = vrot.slane %v1322, %v1447
        %v1453 = vadd.f32 %v1428, %v1436
        %v1454 = vadd.f32 %v1429, %v1440
        %v1455 = vadd.f32 %v1430, %v1444
        %v1456 = vadd.f32 %v1431, %v1448
        %vm1457 = vcmp.gt.f32.partialorder %v1453, 0.0
        %vm1458 = vcmp.gt.f32.partialorder %v1454, 0.0
        %vm1459 = vcmp.gt.f32.partialorder %v1455, 0.0
        %vm1460 = vcmp.gt.f32.partialorder %v1456, 0.0
        %v1461 = vmul.f32 %v1453, 0.2
        %v1462 = vmul.f32 %v1454, 0.2
        %v1463 = vmul.f32 %v1455, 0.2
        %v1464 = vmul.f32 %v1456, 0.2
        %v1465 = vsel %vm1457, %v1453, %v1461
        %v1466 = vsel %vm1458, %v1454, %v1462
        %v1467 = vsel %vm1459, %v1455, %v1463
        %v1468 = vsel %vm1460, %v1456, %v1464
        %v1469 = vtanh.pop %v1465
        %v1470 = vtanh.pop %v1466
        %v1471 = vtanh.pop %v1467
        %v1472 = vtanh.pop %v1468
        %1473 = vst [vmem:[%s353] sm:$0xff] %v1469
        %1474 = vst [vmem:[%s353 + $0x8] sm:$0xff] %v1470
        %1475 = vst [vmem:[%s353 + $0x10] sm:$0xff] %v1471
        %1476 = vst [vmem:[%s353 + $0x18] sm:$0xff] %v1472
        %s1477 = sand.u32 %s161, 1
        %s1478 = scalar_lea.sflag [#allocation4], %s1477
        %s1479 = sand.u32 %s161, 1
        %s1480 = smul.addr %s1479, 32
        %s1481 = scalar_lea.vmem [#allocation10], %s1480
        // Predicated region
        $region57: #{generator_forward.3} parent=39 // pred_check
          %p1482 = pneg %p171
        $region58: #{generator_forward.3} parent=39 // pred_check_branch
          %1484 = sbr.rel (%p1482) target = $region60
        $region59: #{generator_forward.3} parent=39 // pred_region
          %s1485 = smul.u32 4, %s28
          %s1487 = ssub.s32 512, 512
          %1488 = vsyncadd %s1478, %s1487
          %s1489 = smul.addr %s1485, 128
          %s1490 = scalar_lea.hbm %s5, %s1489
          %s1492 = sshll.u32 %s1481, 4
          %s1493 = int_to_ptr.vmem [resolvable:$true] %s1492
          %1495 = dma.vmem_to_hbm [thread:$0]  %s1493, 512, %s1490, %s1478
        $region60: #{generator_forward.3} parent=39 // pred_fallthru
          _
      $region40: #{generator_forward.3} parent=5 // pred_fallthru
        _
      %p1496 = scmp.le.s32.totalorder 2, %s23
      // Predicated region
      $region61: #{generator_forward.3} parent=5 // pred_check
        %p1497 = pneg %p1496
      $region62: #{generator_forward.3} parent=5 // pred_check_branch
        %1499 = sbr.rel (%p1497) target = $region64
      $region63: #{generator_forward.3} parent=5 // pred_region
        %s1500 = ssub.s32 %s23, 2
        // Predicated region
        $region65: #{generator_forward.3} parent=63 // pred_check
          %p1501 = pneg %p177
        $region66: #{generator_forward.3} parent=63 // pred_check_branch
          %1503 = sbr.rel (%p1501) target = $region68
        $region67: #{generator_forward.3} parent=63 // pred_region
          %s1504 = sand.u32 %s162, 1
          %s1505 = scalar_lea.sflag [#allocation4], %s1504
          %s1506 = sand.u32 %s162, 1
          %s1507 = smul.addr %s1506, 32
          %s1508 = scalar_lea.vmem [#allocation10], %s1507
          %1509 = dma.done %s1505, 512
        $region68: #{generator_forward.3} parent=63 // pred_fallthru
          _
      $region64: #{generator_forward.3} parent=5 // pred_fallthru
        _
    $region6: #{generator_forward.3} parent=1 // loop_footer
      %s27 = sadd.s32 1, %s23
    $region7: #{generator_forward.3} parent=1 // loop_footer_branch
      %22 = sbr.rel target = $region3
    $region8: #{generator_forward.3} parent=1 // loop_exit
      _
    %1510 = vsyncpa [#allocation3], 1
    %s1511 = scalar_lea.sflag [#allocation3], 1
    %1512 = vsyncpa %s1511, 1
    %1513 = vsyncpa [#allocation6], 1
    %s1514 = scalar_lea.sflag [#allocation6], 1
    %1515 = vsyncpa %s1514, 1
    %1516 = vsyncpa [#allocation9], 1
    %s1517 = scalar_lea.sflag [#allocation9], 1
    %1518 = vsyncpa %s1517, 1
    %1519 = vsyncpa [#allocation4], 1
    %s1520 = scalar_lea.sflag [#allocation4], 1
    %1521 = vsyncpa %s1520, 1

// kernel: generator_forward.2
$region0: #{generator_forward.2}
  #allocation0 [shape = 'u32[]', space=smem, size = 0x4, offset = 0x4, fixed_abs, tag = 'smem constant byte address 0x4 - core index']
  #allocation1 [shape = 'u32[144,128]{1,0:T(1,128)}', space=vmem, size = 0x12000, scoped, tag = 'internal scratch']
  %s0 = inlined_call_operand.hbm [shape: f32[8,8], index: 0, kind: input, shape index: {}]
  %s1 = inlined_call_operand.hbm [shape: f32[8,16], index: 1, kind: input, shape index: {}]
  %s2 = inlined_call_operand.hbm [shape: bf16[8,128], index: 2, kind: input, shape index: {}]
  %s3 = inlined_call_operand.hbm [shape: bf16[16,128], index: 3, kind: input, shape index: {}]
  %s4 = inlined_call_operand.hbm [shape: f32[1,128], index: 4, kind: input, shape index: {}]
  %s5 = inlined_call_operand.hbm [shape: bf16[128,256], index: 5, kind: input, shape index: {}]
  %s6 = inlined_call_operand.hbm [shape: f32[1,256], index: 6, kind: input, shape index: {}]
  %s7 = inlined_call_operand.hbm [shape: f32[1,256], index: 7, kind: input, shape index: {}]
  %s8 = inlined_call_operand.hbm [shape: f32[1,256], index: 8, kind: input, shape index: {}]
  %s9 = inlined_call_operand.hbm [shape: bf16[256,512], index: 9, kind: input, shape index: {}]
  %s10 = inlined_call_operand.hbm [shape: f32[1,512], index: 10, kind: input, shape index: {}]
  %s11 = inlined_call_operand.hbm [shape: f32[1,512], index: 11, kind: input, shape index: {}]
  %s12 = inlined_call_operand.hbm [shape: f32[1,512], index: 12, kind: input, shape index: {}]
  %s13 = inlined_call_operand.vmem [shape: f32[8,512], index: 13, kind: output, shape index: {}]
  %s14 = sld [smem:[#allocation0]]
  $region114: #{generator_forward.2} parent=0
    _
  %s16 = ssub.s32 1, %s14
  %s17 = scalar_select 0, %s16, %s14
  $region1: #{generator_forward.2} parent=0
    #allocation2 [shape = 'u8[4096]{0}', space=vmem, size = 0x1000, scoped, tag = 'input window, operand 0, single buffered']
    #allocation3 [shape = 's32[1]{0}', space=sflag, size = 0x4, scoped, tag = 'scoped memory for generator_forward.2']
    #allocation4 [shape = 'u8[4096]{0}', space=vmem, size = 0x1000, scoped, tag = 'input window, operand 1, single buffered']
    #allocation5 [shape = 's32[1]{0}', space=sflag, size = 0x4, scoped, tag = 'scoped memory for generator_forward.2']
    #allocation6 [shape = 'u8[2048]{0}', space=vmem, size = 0x800, scoped, tag = 'input window, operand 2, single buffered']
    #allocation7 [shape = 'u8[4096]{0}', space=vmem, size = 0x1000, scoped, tag = 'input window, operand 3, single buffered']
    #allocation8 [shape = 's32[1]{0}', space=sflag, size = 0x4, scoped, tag = 'scoped memory for generator_forward.2']
    #allocation9 [shape = 'u8[512]{0}', space=vmem, size = 0x400, scoped, tag = 'input window, operand 4, single buffered']
    #allocation10 [shape = 'u8[65536]{0}', space=vmem, size = 0x10000, scoped, tag = 'input window, operand 5, single buffered']
    #allocation11 [shape = 's32[1]{0}', space=sflag, size = 0x4, scoped, tag = 'scoped memory for generator_forward.2']
    #allocation12 [shape = 'u8[1024]{0}', space=vmem, size = 0x400, scoped, tag = 'input window, operand 6, single buffered']
    #allocation13 [shape = 'u8[1024]{0}', space=vmem, size = 0x400, scoped, tag = 'input window, operand 7, single buffered']
    #allocation14 [shape = 's32[1]{0}', space=sflag, size = 0x4, scoped, tag = 'scoped memory for generator_forward.2']
    #allocation15 [shape = 'u8[1024]{0}', space=vmem, size = 0x400, scoped, tag = 'input window, operand 8, single buffered']
    #allocation16 [shape = 'u8[262144]{0}', space=vmem, size = 0x40000, scoped, tag = 'input window, operand 9, single buffered']
    #allocation17 [shape = 's32[1]{0}', space=sflag, size = 0x4, scoped, tag = 'scoped memory for generator_forward.2']
    #allocation18 [shape = 'u8[2048]{0}', space=vmem, size = 0x800, scoped, tag = 'input window, operand 10, single buffered']
    #allocation19 [shape = 'u8[2048]{0}', space=vmem, size = 0x800, scoped, tag = 'input window, operand 11, single buffered']
    #allocation20 [shape = 's32[1]{0}', space=sflag, size = 0x4, scoped, tag = 'scoped memory for generator_forward.2']
    #allocation21 [shape = 'u8[2048]{0}', space=vmem, size = 0x800, scoped, tag = 'input window, operand 12, single buffered']
    %18 = vsyncpa [#allocation3], 0
    %19 = vsyncpa [#allocation5], 0
    %20 = vsyncpa [#allocation8], 0
    %21 = vsyncpa [#allocation11], 0
    %22 = vsyncpa [#allocation14], 0
    %23 = vsyncpa [#allocation17], 0
    %24 = vsyncpa [#allocation20], 0
    // Predicated region
    $region2: #{generator_forward.2} parent=1 // pred_check
      _
    $region3: #{generator_forward.2} parent=1 // pred_check_branch
      %26 = sbr.rel (0) target = $region5
    $region4: #{generator_forward.2} parent=1 // pred_region
      %s28 = ssub.s32 128, 128
      %29 = vsyncadd [#allocation3], %s28
      %s31 = sshll.u32 [#allocation2], 4
      %s32 = int_to_ptr.vmem [resolvable:$true] %s31
      %34 = dma.hbm_to_vmem [thread:$0]  %s0, 128, %s32, [#allocation3]
    $region5: #{generator_forward.2} parent=1 // pred_fallthru
      _
    // Predicated region
    $region6: #{generator_forward.2} parent=1 // pred_check
      _
    $region7: #{generator_forward.2} parent=1 // pred_check_branch
      %36 = sbr.rel (0) target = $region9
    $region8: #{generator_forward.2} parent=1 // pred_region
      %s38 = ssub.s32 128, 128
      %39 = vsyncadd [#allocation5], %s38
      %s41 = sshll.u32 [#allocation4], 4
      %s42 = int_to_ptr.vmem [resolvable:$true] %s41
      %44 = dma.hbm_to_vmem [thread:$0]  %s1, 128, %s42, [#allocation5]
    $region9: #{generator_forward.2} parent=1 // pred_fallthru
      _
    // Predicated region
    $region10: #{generator_forward.2} parent=1 // pred_check
      _
    $region11: #{generator_forward.2} parent=1 // pred_check_branch
      %46 = sbr.rel (0) target = $region13
    $region12: #{generator_forward.2} parent=1 // pred_region
      %s48 = ssub.s32 64, 64
      %49 = vsyncadd [#allocation5], %s48
      %s51 = sshll.u32 [#allocation6], 4
      %s52 = int_to_ptr.vmem [resolvable:$true] %s51
      %54 = dma.hbm_to_vmem [thread:$0]  %s2, 64, %s52, [#allocation5]
    $region13: #{generator_forward.2} parent=1 // pred_fallthru
      _
    // Predicated region
    $region14: #{generator_forward.2} parent=1 // pred_check
      _
    $region15: #{generator_forward.2} parent=1 // pred_check_branch
      %56 = sbr.rel (0) target = $region17
    $region16: #{generator_forward.2} parent=1 // pred_region
      %s58 = ssub.s32 128, 128
      %59 = vsyncadd [#allocation8], %s58
      %s60 = sshll.u32 [#allocation7], 4
      %s61 = int_to_ptr.vmem [resolvable:$true] %s60
      %66 = dma.hbm_to_vmem [thread:$0]  %s3, 128, %s61, [#allocation8], 64, 64, 4
    $region17: #{generator_forward.2} parent=1 // pred_fallthru
      _
    // Predicated region
    $region18: #{generator_forward.2} parent=1 // pred_check
      _
    $region19: #{generator_forward.2} parent=1 // pred_check_branch
      %68 = sbr.rel (0) target = $region21
    $region20: #{generator_forward.2} parent=1 // pred_region
      %s70 = ssub.s32 16, 16
      %71 = vsyncadd [#allocation8], %s70
      %s73 = sshll.u32 [#allocation9], 4
      %s74 = int_to_ptr.vmem [resolvable:$true] %s73
      %76 = dma.hbm_to_vmem [thread:$0]  %s4, 16, %s74, [#allocation8]
    $region21: #{generator_forward.2} parent=1 // pred_fallthru
      _
    // Predicated region
    $region22: #{generator_forward.2} parent=1 // pred_check
      _
    $region23: #{generator_forward.2} parent=1 // pred_check_branch
      %78 = sbr.rel (0) target = $region25
    $region24: #{generator_forward.2} parent=1 // pred_region
      %s80 = ssub.s32 2048, 2048
      %81 = vsyncadd [#allocation11], %s80
      %s82 = sshll.u32 [#allocation10], 4
      %s83 = int_to_ptr.vmem [resolvable:$true] %s82
      %88 = dma.hbm_to_vmem [thread:$0]  %s5, 2048, %s83, [#allocation11], 128, 128, 8
    $region25: #{generator_forward.2} parent=1 // pred_fallthru
      _
    // Predicated region
    $region26: #{generator_forward.2} parent=1 // pred_check
      _
    $region27: #{generator_forward.2} parent=1 // pred_check_branch
      %90 = sbr.rel (0) target = $region29
    $region28: #{generator_forward.2} parent=1 // pred_region
      %s92 = ssub.s32 32, 32
      %93 = vsyncadd [#allocation11], %s92
      %s95 = sshll.u32 [#allocation12], 4
      %s96 = int_to_ptr.vmem [resolvable:$true] %s95
      %98 = dma.hbm_to_vmem [thread:$0]  %s6, 32, %s96, [#allocation11]
    $region29: #{generator_forward.2} parent=1 // pred_fallthru
      _
    // Predicated region
    $region30: #{generator_forward.2} parent=1 // pred_check
      _
    $region31: #{generator_forward.2} parent=1 // pred_check_branch
      %100 = sbr.rel (0) target = $region33
    $region32: #{generator_forward.2} parent=1 // pred_region
      %s102 = ssub.s32 32, 32
      %103 = vsyncadd [#allocation14], %s102
      %s105 = sshll.u32 [#allocation13], 4
      %s106 = int_to_ptr.vmem [resolvable:$true] %s105
      %108 = dma.hbm_to_vmem [thread:$0]  %s7, 32, %s106, [#allocation14]
    $region33: #{generator_forward.2} parent=1 // pred_fallthru
      _
    // Predicated region
    $region34: #{generator_forward.2} parent=1 // pred_check
      _
    $region35: #{generator_forward.2} parent=1 // pred_check_branch
      %110 = sbr.rel (0) target = $region37
    $region36: #{generator_forward.2} parent=1 // pred_region
      %s112 = ssub.s32 32, 32
      %113 = vsyncadd [#allocation14], %s112
      %s115 = sshll.u32 [#allocation15], 4
      %s116 = int_to_ptr.vmem [resolvable:$true] %s115
      %118 = dma.hbm_to_vmem [thread:$0]  %s8, 32, %s116, [#allocation14]
    $region37: #{generator_forward.2} parent=1 // pred_fallthru
      _
    // Predicated region
    $region38: #{generator_forward.2} parent=1 // pred_check
      _
    $region39: #{generator_forward.2} parent=1 // pred_check_branch
      %120 = sbr.rel (0) target = $region41
    $region40: #{generator_forward.2} parent=1 // pred_region
      %s122 = ssub.s32 8192, 8192
      %123 = vsyncadd [#allocation17], %s122
      %s124 = sshll.u32 [#allocation16], 4
      %s125 = int_to_ptr.vmem [resolvable:$true] %s124
      %130 = dma.hbm_to_vmem [thread:$0]  %s9, 8192, %s125, [#allocation17], 256, 256, 16
    $region41: #{generator_forward.2} parent=1 // pred_fallthru
      _
    // Predicated region
    $region42: #{generator_forward.2} parent=1 // pred_check
      _
    $region43: #{generator_forward.2} parent=1 // pred_check_branch
      %132 = sbr.rel (0) target = $region45
    $region44: #{generator_forward.2} parent=1 // pred_region
      %s134 = ssub.s32 64, 64
      %135 = vsyncadd [#allocation17], %s134
      %s137 = sshll.u32 [#allocation18], 4
      %s138 = int_to_ptr.vmem [resolvable:$true] %s137
      %140 = dma.hbm_to_vmem [thread:$0]  %s10, 64, %s138, [#allocation17]
    $region45: #{generator_forward.2} parent=1 // pred_fallthru
      _
    // Predicated region
    $region46: #{generator_forward.2} parent=1 // pred_check
      _
    $region47: #{generator_forward.2} parent=1 // pred_check_branch
      %142 = sbr.rel (0) target = $region49
    $region48: #{generator_forward.2} parent=1 // pred_region
      %s144 = ssub.s32 64, 64
      %145 = vsyncadd [#allocation20], %s144
      %s147 = sshll.u32 [#allocation19], 4
      %s148 = int_to_ptr.vmem [resolvable:$true] %s147
      %150 = dma.hbm_to_vmem [thread:$0]  %s11, 64, %s148, [#allocation20]
    $region49: #{generator_forward.2} parent=1 // pred_fallthru
      _
    // Predicated region
    $region50: #{generator_forward.2} parent=1 // pred_check
      _
    $region51: #{generator_forward.2} parent=1 // pred_check_branch
      %152 = sbr.rel (0) target = $region53
    $region52: #{generator_forward.2} parent=1 // pred_region
      %s154 = ssub.s32 64, 64
      %155 = vsyncadd [#allocation20], %s154
      %s157 = sshll.u32 [#allocation21], 4
      %s158 = int_to_ptr.vmem [resolvable:$true] %s157
      %160 = dma.hbm_to_vmem [thread:$0]  %s12, 64, %s158, [#allocation20]
    $region53: #{generator_forward.2} parent=1 // pred_fallthru
      _
    // Predicated region
    $region54: #{generator_forward.2} parent=1 // pred_check
      _
    $region55: #{generator_forward.2} parent=1 // pred_check_branch
      %162 = sbr.rel (0) target = $region57
    $region56: #{generator_forward.2} parent=1 // pred_region
      %163 = dma.done [#allocation3], 128
    $region57: #{generator_forward.2} parent=1 // pred_fallthru
      _
    // Predicated region
    $region58: #{generator_forward.2} parent=1 // pred_check
      _
    $region59: #{generator_forward.2} parent=1 // pred_check_branch
      %165 = sbr.rel (0) target = $region61
    $region60: #{generator_forward.2} parent=1 // pred_region
      %166 = dma.done [#allocation5], 128
    $region61: #{generator_forward.2} parent=1 // pred_fallthru
      _
    // Predicated region
    $region62: #{generator_forward.2} parent=1 // pred_check
      _
    $region63: #{generator_forward.2} parent=1 // pred_check_branch
      %168 = sbr.rel (0) target = $region65
    $region64: #{generator_forward.2} parent=1 // pred_region
      %169 = dma.done [#allocation5], 64
    $region65: #{generator_forward.2} parent=1 // pred_fallthru
      _
    // Predicated region
    $region66: #{generator_forward.2} parent=1 // pred_check
      _
    $region67: #{generator_forward.2} parent=1 // pred_check_branch
      %171 = sbr.rel (0) target = $region69
    $region68: #{generator_forward.2} parent=1 // pred_region
      %172 = dma.done [#allocation8], 128
    $region69: #{generator_forward.2} parent=1 // pred_fallthru
      _
    // Predicated region
    $region70: #{generator_forward.2} parent=1 // pred_check
      _
    $region71: #{generator_forward.2} parent=1 // pred_check_branch
      %174 = sbr.rel (0) target = $region73
    $region72: #{generator_forward.2} parent=1 // pred_region
      %175 = dma.done [#allocation8], 16
    $region73: #{generator_forward.2} parent=1 // pred_fallthru
      _
    // Predicated region
    $region74: #{generator_forward.2} parent=1 // pred_check
      _
    $region75: #{generator_forward.2} parent=1 // pred_check_branch
      %177 = sbr.rel (0) target = $region77
    $region76: #{generator_forward.2} parent=1 // pred_region
      %178 = dma.done [#allocation11], 2048
    $region77: #{generator_forward.2} parent=1 // pred_fallthru
      _
    // Predicated region
    $region78: #{generator_forward.2} parent=1 // pred_check
      _
    $region79: #{generator_forward.2} parent=1 // pred_check_branch
      %180 = sbr.rel (0) target = $region81
    $region80: #{generator_forward.2} parent=1 // pred_region
      %181 = dma.done [#allocation11], 32
    $region81: #{generator_forward.2} parent=1 // pred_fallthru
      _
    // Predicated region
    $region82: #{generator_forward.2} parent=1 // pred_check
      _
    $region83: #{generator_forward.2} parent=1 // pred_check_branch
      %183 = sbr.rel (0) target = $region85
    $region84: #{generator_forward.2} parent=1 // pred_region
      %184 = dma.done [#allocation14], 32
    $region85: #{generator_forward.2} parent=1 // pred_fallthru
      _
    // Predicated region
    $region86: #{generator_forward.2} parent=1 // pred_check
      _
    $region87: #{generator_forward.2} parent=1 // pred_check_branch
      %186 = sbr.rel (0) target = $region89
    $region88: #{generator_forward.2} parent=1 // pred_region
      %187 = dma.done [#allocation14], 32
    $region89: #{generator_forward.2} parent=1 // pred_fallthru
      _
    // Predicated region
    $region90: #{generator_forward.2} parent=1 // pred_check
      _
    $region91: #{generator_forward.2} parent=1 // pred_check_branch
      %189 = sbr.rel (0) target = $region93
    $region92: #{generator_forward.2} parent=1 // pred_region
      %190 = dma.done [#allocation17], 8192
    $region93: #{generator_forward.2} parent=1 // pred_fallthru
      _
    // Predicated region
    $region94: #{generator_forward.2} parent=1 // pred_check
      _
    $region95: #{generator_forward.2} parent=1 // pred_check_branch
      %192 = sbr.rel (0) target = $region97
    $region96: #{generator_forward.2} parent=1 // pred_region
      %193 = dma.done [#allocation17], 64
    $region97: #{generator_forward.2} parent=1 // pred_fallthru
      _
    // Predicated region
    $region98: #{generator_forward.2} parent=1 // pred_check
      _
    $region99: #{generator_forward.2} parent=1 // pred_check_branch
      %195 = sbr.rel (0) target = $region101
    $region100: #{generator_forward.2} parent=1 // pred_region
      %196 = dma.done [#allocation20], 64
    $region101: #{generator_forward.2} parent=1 // pred_fallthru
      _
    // Predicated region
    $region102: #{generator_forward.2} parent=1 // pred_check
      _
    $region103: #{generator_forward.2} parent=1 // pred_check_branch
      %198 = sbr.rel (0) target = $region105
    $region104: #{generator_forward.2} parent=1 // pred_region
      %199 = dma.done [#allocation20], 64
    $region105: #{generator_forward.2} parent=1 // pred_fallthru
      _
    %v201 = vld [vmem:[#allocation2] sm:$0xff]
    %v202 = vpack.c.bf16 %v201, %v201
    %v203 = vld [vmem:[#allocation4] sm:$0xff]
    %v204 = vpack.c.bf16 %v203, %v203
    %v205 = vld [vmem:[#allocation6] sm:$0xf]
    %v206 = vld [vmem:[#allocation7] sm:$0xf]
    %v207 = vld [vmem:[#allocation7 + $0x4] sm:$0xf]
    %v210 = vunpack.c.l.b16 %v206
    %v211 = vunpack.c.l.b16 %v207
    %v212 = vpack.c.b16 %v211, %v210
    %vm214 = vcmask 130048
    %v216 = vsel %vm214, %v204, 0
    %218 = vmatprep.subr.bf16.mxu0 0
    %219 = vmatpush1.bf16.msra.mxu0 %v212
    %220 = vmatprep.subr.bf16.mxu0 0
    %221 = vmatpush1.bf16.msra.mxu0 0
    %222 = vmatprep.subr.bf16.mxu0 0
    %223 = vmatpush1.bf16.msra.mxu0 0
    %224 = vmatprep.subr.bf16.mxu0 0
    %225 = vmatpush1.bf16.msra.mxu0 0
    %226 = vmatprep.subr.bf16.mxu0 0
    %227 = vmatpush1.bf16.msra.mxu0 0
    %228 = vmatprep.subr.bf16.mxu0 0
    %229 = vmatpush1.bf16.msra.mxu0 0
    %230 = vmatprep.subr.bf16.mxu0 0
    %231 = vmatpush1.bf16.msra.mxu0 0
    %232 = vmatprep.subr.bf16.mxu0 0
    %233 = vmatpush1.bf16.msra.mxu0 0
    %234 = vmatprep.subr.bf16.mxu0 0
    %235 = vmatpush1.bf16.msra.mxu0 0
    %236 = vmatprep.subr.bf16.mxu0 0
    %237 = vmatpush1.bf16.msra.mxu0 0
    %238 = vmatprep.subr.bf16.mxu0 0
    %239 = vmatpush1.bf16.msra.mxu0 0
    %240 = vmatprep.subr.bf16.mxu0 0
    %241 = vmatpush1.bf16.msra.mxu0 0
    %242 = vmatprep.subr.bf16.mxu0 0
    %243 = vmatpush1.bf16.msra.mxu0 0
    %244 = vmatprep.subr.bf16.mxu0 0
    %245 = vmatpush1.bf16.msra.mxu0 0
    %246 = vmatprep.subr.bf16.mxu0 0
    %247 = vmatpush1.bf16.msra.mxu0 0
    %248 = vmatprep.subr.bf16.mxu0 0
    %249 = vmatpush1.bf16.msra.mxu0 0
    %250 = vmatprep.mubr.bf16.mxu0 0
    %251 = vmatmul.mubr.bf16.gmra.mrb[0].mxu0 %v216
    %v252 = vpop.f32.mrb[0].mxu0
    %v253 = vadd.f32 0.0, %v252
    %v254 = vpop.f32.mrb[0].mxu0
    %v255 = vpop.f32.mrb[0].mxu0
    %v256 = vpop.f32.mrb[0].mxu0
    %257 = vdwg.mxu0
    %vm258 = vcmask 64512
    %v260 = vsel %vm258, %v202, 0
    %vm262 = vcmask 1043456
    %v264 = vsel %vm262, %v205, 0
    %266 = vmatprep.subr.bf16.mxu0 0
    %267 = vmatpush1.bf16.msra.mxu0 %v264
    %268 = vmatprep.subr.bf16.mxu0 0
    %269 = vmatpush1.bf16.msra.mxu0 0
    %270 = vmatprep.subr.bf16.mxu0 0
    %271 = vmatpush1.bf16.msra.mxu0 0
    %272 = vmatprep.subr.bf16.mxu0 0
    %273 = vmatpush1.bf16.msra.mxu0 0
    %274 = vmatprep.subr.bf16.mxu0 0
    %275 = vmatpush1.bf16.msra.mxu0 0
    %276 = vmatprep.subr.bf16.mxu0 0
    %277 = vmatpush1.bf16.msra.mxu0 0
    %278 = vmatprep.subr.bf16.mxu0 0
    %279 = vmatpush1.bf16.msra.mxu0 0
    %280 = vmatprep.subr.bf16.mxu0 0
    %281 = vmatpush1.bf16.msra.mxu0 0
    %282 = vmatprep.subr.bf16.mxu0 0
    %283 = vmatpush1.bf16.msra.mxu0 0
    %284 = vmatprep.subr.bf16.mxu0 0
    %285 = vmatpush1.bf16.msra.mxu0 0
    %286 = vmatprep.subr.bf16.mxu0 0
    %287 = vmatpush1.bf16.msra.mxu0 0
    %288 = vmatprep.subr.bf16.mxu0 0
    %289 = vmatpush1.bf16.msra.mxu0 0
    %290 = vmatprep.subr.bf16.mxu0 0
    %291 = vmatpush1.bf16.msra.mxu0 0
    %292 = vmatprep.subr.bf16.mxu0 0
    %293 = vmatpush1.bf16.msra.mxu0 0
    %294 = vmatprep.subr.bf16.mxu0 0
    %295 = vmatpush1.bf16.msra.mxu0 0
    %296 = vmatprep.subr.bf16.mxu0 0
    %297 = vmatpush1.bf16.msra.mxu0 0
    %298 = vmatprep.mubr.bf16.mxu0 0
    %299 = vmatmul.mubr.bf16.gmra.mrb[0].mxu0 %v260
    %v300 = vpop.f32.mrb[0].mxu0
    %v301 = vadd.f32 %v253, %v300
    %v302 = vpop.f32.mrb[0].mxu0
    %v303 = vpop.f32.mrb[0].mxu0
    %v304 = vpop.f32.mrb[0].mxu0
    %305 = vdwg.mxu0
    %v306 = vld [vmem:[#allocation9] sm:$0x1]
    %v308 = vlaneseq
    %v309 = vshrl.u32 %v308, 7
    %v310 = vsub.s32 0, %v309
    %v311 = vrot.slane %v306, %v310
    %v313 = vadd.f32 %v301, %v311
    %vm314 = vcmp.gt.f32.partialorder %v313, 0.0
    %v315 = vmul.f32 %v313, 0.2
    %v316 = vsel %vm314, %v313, %v315
    %v317 = vpack.c.bf16 %v316, %v316
    %v318 = vld [vmem:[#allocation10] sm:$0xff]
    %v319 = vld [vmem:[#allocation10 + $0x8] sm:$0xff]
    %v320 = vld [vmem:[#allocation10 + $0x10] sm:$0xff]
    %v321 = vld [vmem:[#allocation10 + $0x18] sm:$0xff]
    %v322 = vld [vmem:[#allocation10 + $0x20] sm:$0xff]
    %v323 = vld [vmem:[#allocation10 + $0x28] sm:$0xff]
    %v324 = vld [vmem:[#allocation10 + $0x30] sm:$0xff]
    %v325 = vld [vmem:[#allocation10 + $0x38] sm:$0xff]
    %v326 = vld [vmem:[#allocation10 + $0x40] sm:$0xff]
    %v327 = vld [vmem:[#allocation10 + $0x48] sm:$0xff]
    %v328 = vld [vmem:[#allocation10 + $0x50] sm:$0xff]
    %v329 = vld [vmem:[#allocation10 + $0x58] sm:$0xff]
    %v330 = vld [vmem:[#allocation10 + $0x60] sm:$0xff]
    %v331 = vld [vmem:[#allocation10 + $0x68] sm:$0xff]
    %v332 = vld [vmem:[#allocation10 + $0x70] sm:$0xff]
    %v333 = vld [vmem:[#allocation10 + $0x78] sm:$0xff]
    %v334 = vld [vmem:[#allocation12] sm:$0x3]
    %v336 = vlaneseq
    %v337 = vshrl.u32 %v336, 7
    %v338 = vsub.s32 0, %v337
    %v339 = vrot.slane %v334, %v338
    %v340 = vlaneseq
    %v341 = vshrl.u32 %v340, 7
    %v342 = vsub.s32 1, %v341
    %v343 = vrot.slane %v334, %v342
    %v362 = vunpack.c.l.b16 %v318
    %v363 = vunpack.c.h.b16 %v318
    %v364 = vunpack.c.l.b16 %v319
    %v365 = vunpack.c.h.b16 %v319
    %v366 = vunpack.c.l.b16 %v320
    %v367 = vunpack.c.h.b16 %v320
    %v368 = vunpack.c.l.b16 %v321
    %v369 = vunpack.c.h.b16 %v321
    %v370 = vunpack.c.l.b16 %v322
    %v371 = vunpack.c.h.b16 %v322
    %v372 = vunpack.c.l.b16 %v323
    %v373 = vunpack.c.h.b16 %v323
    %v374 = vunpack.c.l.b16 %v324
    %v375 = vunpack.c.h.b16 %v324
    %v376 = vunpack.c.l.b16 %v325
    %v377 = vunpack.c.h.b16 %v325
    %v378 = vunpack.c.l.b16 %v326
    %v379 = vunpack.c.h.b16 %v326
    %v380 = vunpack.c.l.b16 %v327
    %v381 = vunpack.c.h.b16 %v327
    %v382 = vunpack.c.l.b16 %v328
    %v383 = vunpack.c.h.b16 %v328
    %v384 = vunpack.c.l.b16 %v329
    %v385 = vunpack.c.h.b16 %v329
    %v386 = vunpack.c.l.b16 %v330
    %v387 = vunpack.c.h.b16 %v330
    %v388 = vunpack.c.l.b16 %v331
    %v389 = vunpack.c.h.b16 %v331
    %v390 = vunpack.c.l.b16 %v332
    %v391 = vunpack.c.h.b16 %v332
    %v392 = vunpack.c.l.b16 %v333
    %v393 = vunpack.c.h.b16 %v333
    %v394 = vpack.c.b16 %v364, %v362
    %v395 = vpack.c.b16 %v365, %v363
    %v396 = vpack.c.b16 %v368, %v366
    %v397 = vpack.c.b16 %v369, %v367
    %v398 = vpack.c.b16 %v372, %v370
    %v399 = vpack.c.b16 %v373, %v371
    %v400 = vpack.c.b16 %v376, %v374
    %v401 = vpack.c.b16 %v377, %v375
    %v402 = vpack.c.b16 %v380, %v378
    %v403 = vpack.c.b16 %v381, %v379
    %v404 = vpack.c.b16 %v384, %v382
    %v405 = vpack.c.b16 %v385, %v383
    %v406 = vpack.c.b16 %v388, %v386
    %v407 = vpack.c.b16 %v389, %v387
    %v408 = vpack.c.b16 %v392, %v390
    %v409 = vpack.c.b16 %v393, %v391
    %426 = vmatprep.subr.bf16.mxu0 %v395
    %427 = vmatpush1.bf16.msra.mxu0 %v394
    %428 = vmatprep.subr.bf16.mxu0 %v397
    %429 = vmatpush1.bf16.msra.mxu0 %v396
    %430 = vmatprep.subr.bf16.mxu0 %v399
    %431 = vmatpush1.bf16.msra.mxu0 %v398
    %432 = vmatprep.subr.bf16.mxu0 %v401
    %433 = vmatpush1.bf16.msra.mxu0 %v400
    %434 = vmatprep.subr.bf16.mxu0 %v403
    %435 = vmatpush1.bf16.msra.mxu0 %v402
    %436 = vmatprep.subr.bf16.mxu0 %v405
    %437 = vmatpush1.bf16.msra.mxu0 %v404
    %438 = vmatprep.subr.bf16.mxu0 %v407
    %439 = vmatpush1.bf16.msra.mxu0 %v406
    %440 = vmatprep.subr.bf16.mxu0 %v409
    %441 = vmatpush1.bf16.msra.mxu0 %v408
    %442 = vmatprep.subr.bf16.mxu0 0
    %443 = vmatpush1.bf16.msra.mxu0 0
    %444 = vmatprep.subr.bf16.mxu0 0
    %445 = vmatpush1.bf16.msra.mxu0 0
    %446 = vmatprep.subr.bf16.mxu0 0
    %447 = vmatpush1.bf16.msra.mxu0 0
    %448 = vmatprep.subr.bf16.mxu0 0
    %449 = vmatpush1.bf16.msra.mxu0 0
    %450 = vmatprep.subr.bf16.mxu0 0
    %451 = vmatpush1.bf16.msra.mxu0 0
    %452 = vmatprep.subr.bf16.mxu0 0
    %453 = vmatpush1.bf16.msra.mxu0 0
    %454 = vmatprep.subr.bf16.mxu0 0
    %455 = vmatpush1.bf16.msra.mxu0 0
    %456 = vmatprep.subr.bf16.mxu0 0
    %457 = vmatpush1.bf16.msra.mxu0 0
    %458 = vmatprep.mubr.bf16.mxu0 0
    %459 = vmatmul.mubr.bf16.gmra.mrb[0].mxu0 %v317
    %v460 = vpop.f32.mrb[0].mxu0
    %v461 = vadd.f32 %v339, %v460
    %v462 = vpop.f32.mrb[0].mxu0
    %v463 = vadd.f32 %v343, %v462
    %v464 = vpop.f32.mrb[0].mxu0
    %v465 = vpop.f32.mrb[0].mxu0
    %466 = vdwg.mxu0
    %v467 = vld [vmem:[#allocation13] sm:$0x3]
    %v468 = vld [vmem:[#allocation15] sm:$0x3]
    %v469 = vrot.slane %v461, 4
    %v470 = vadd.f32 %v461, %v469
    %v471 = vrot.slane %v470, 2
    %v472 = vadd.f32 %v470, %v471
    %v473 = vrot.slane %v472, 1
    %v474 = vadd.f32 %v472, %v473
    %v475 = vrot.slane %v463, 4
    %v476 = vadd.f32 %v463, %v475
    %v477 = vrot.slane %v476, 2
    %v478 = vadd.f32 %v476, %v477
    %v479 = vrot.slane %v478, 1
    %v480 = vadd.f32 %v478, %v479
    %v481 = vmul.f32 %v461, %v461
    %v482 = vmul.f32 %v463, %v463
    %v483 = vrot.slane %v481, 4
    %v484 = vadd.f32 %v481, %v483
    %v485 = vrot.slane %v484, 2
    %v486 = vadd.f32 %v484, %v485
    %v487 = vrot.slane %v486, 1
    %v488 = vadd.f32 %v486, %v487
    %v489 = vrot.slane %v482, 4
    %v490 = vadd.f32 %v482, %v489
    %v491 = vrot.slane %v490, 2
    %v492 = vadd.f32 %v490, %v491
    %v493 = vrot.slane %v492, 1
    %v494 = vadd.f32 %v492, %v493
    %v495 = vmul.f32 %v474, 0.125
    %v496 = vmul.f32 %v480, 0.125
    %v497 = vmul.f32 %v488, 0.125
    %v498 = vmul.f32 %v494, 0.125
    %v499 = vmul.f32 %v495, %v495
    %v500 = vmul.f32 %v496, %v496
    %v501 = vsub.f32 %v497, %v499
    %v502 = vsub.f32 %v498, %v500
    %v503 = vsub.f32 %v461, %v495
    %v504 = vsub.f32 %v463, %v496
    %v505 = vadd.f32 %v501, 0.8
    %v506 = vadd.f32 %v502, 0.8
    %v507 = vrsqrt.pop %v505
    %v508 = vrsqrt.pop %v506
    %v509 = vmul.f32 %v503, %v507
    %v510 = vmul.f32 %v504, %v508
    %v512 = vlaneseq
    %v513 = vshrl.u32 %v512, 7
    %v514 = vsub.s32 0, %v513
    %v515 = vrot.slane %v467, %v514
    %v516 = vlaneseq
    %v517 = vshrl.u32 %v516, 7
    %v518 = vsub.s32 1, %v517
    %v519 = vrot.slane %v467, %v518
    %v522 = vmul.f32 %v509, %v515
    %v523 = vmul.f32 %v510, %v519
    %v525 = vlaneseq
    %v526 = vshrl.u32 %v525, 7
    %v527 = vsub.s32 0, %v526
    %v528 = vrot.slane %v468, %v527
    %v529 = vlaneseq
    %v530 = vshrl.u32 %v529, 7
    %v531 = vsub.s32 1, %v530
    %v532 = vrot.slane %v468, %v531
    %v535 = vadd.f32 %v522, %v528
    %v536 = vadd.f32 %v523, %v532
    %vm537 = vcmp.gt.f32.partialorder %v535, 0.0
    %vm538 = vcmp.gt.f32.partialorder %v536, 0.0
    %v539 = vmul.f32 %v535, 0.2
    %v540 = vmul.f32 %v536, 0.2
    %v541 = vsel %vm537, %v535, %v539
    %v542 = vsel %vm538, %v536, %v540
    %v543 = vpack.c.bf16 %v541, %v541
    %v544 = vpack.c.bf16 %v542, %v542
    %v545 = vld [vmem:[#allocation16] sm:$0xff]
    %v546 = vld [vmem:[#allocation16 + $0x8] sm:$0xff]
    %v547 = vld [vmem:[#allocation16 + $0x10] sm:$0xff]
    %v548 = vld [vmem:[#allocation16 + $0x18] sm:$0xff]
    %v549 = vld [vmem:[#allocation16 + $0x20] sm:$0xff]
    %v550 = vld [vmem:[#allocation16 + $0x28] sm:$0xff]
    %v551 = vld [vmem:[#allocation16 + $0x30] sm:$0xff]
    %v552 = vld [vmem:[#allocation16 + $0x38] sm:$0xff]
    %v553 = vld [vmem:[#allocation16 + $0x40] sm:$0xff]
    %v554 = vld [vmem:[#allocation16 + $0x48] sm:$0xff]
    %v555 = vld [vmem:[#allocation16 + $0x50] sm:$0xff]
    %v556 = vld [vmem:[#allocation16 + $0x58] sm:$0xff]
    %v557 = vld [vmem:[#allocation16 + $0x60] sm:$0xff]
    %v558 = vld [vmem:[#allocation16 + $0x68] sm:$0xff]
    %v559 = vld [vmem:[#allocation16 + $0x70] sm:$0xff]
    %v560 = vld [vmem:[#allocation16 + $0x78] sm:$0xff]
    %v561 = vld [vmem:[#allocation16 + $0x80] sm:$0xff]
    %v562 = vld [vmem:[#allocation16 + $0x88] sm:$0xff]
    %v563 = vld [vmem:[#allocation16 + $0x90] sm:$0xff]
    %v564 = vld [vmem:[#allocation16 + $0x98] sm:$0xff]
    %v565 = vld [vmem:[#allocation16 + $0xa0] sm:$0xff]
    %v566 = vld [vmem:[#allocation16 + $0xa8] sm:$0xff]
    %v567 = vld [vmem:[#allocation16 + $0xb0] sm:$0xff]
    %v568 = vld [vmem:[#allocation16 + $0xb8] sm:$0xff]
    %v569 = vld [vmem:[#allocation16 + $0xc0] sm:$0xff]
    %v570 = vld [vmem:[#allocation16 + $0xc8] sm:$0xff]
    %v571 = vld [vmem:[#allocation16 + $0xd0] sm:$0xff]
    %v572 = vld [vmem:[#allocation16 + $0xd8] sm:$0xff]
    %v573 = vld [vmem:[#allocation16 + $0xe0] sm:$0xff]
    %v574 = vld [vmem:[#allocation16 + $0xe8] sm:$0xff]
    %v575 = vld [vmem:[#allocation16 + $0xf0] sm:$0xff]
    %v576 = vld [vmem:[#allocation16 + $0xf8] sm:$0xff]
    %v577 = vld [vmem:[#allocation16 + $0x100] sm:$0xff]
    %v578 = vld [vmem:[#allocation16 + $0x108] sm:$0xff]
    %v579 = vld [vmem:[#allocation16 + $0x110] sm:$0xff]
    %v580 = vld [vmem:[#allocation16 + $0x118] sm:$0xff]
    %v581 = vld [vmem:[#allocation16 + $0x120] sm:$0xff]
    %v582 = vld [vmem:[#allocation16 + $0x128] sm:$0xff]
    %v583 = vld [vmem:[#allocation16 + $0x130] sm:$0xff]
    %v584 = vld [vmem:[#allocation16 + $0x138] sm:$0xff]
    %v585 = vld [vmem:[#allocation16 + $0x140] sm:$0xff]
    %v586 = vld [vmem:[#allocation16 + $0x148] sm:$0xff]
    %v587 = vld [vmem:[#allocation16 + $0x150] sm:$0xff]
    %v588 = vld [vmem:[#allocation16 + $0x158] sm:$0xff]
    %v589 = vld [vmem:[#allocation16 + $0x160] sm:$0xff]
    %v590 = vld [vmem:[#allocation16 + $0x168] sm:$0xff]
    %v591 = vld [vmem:[#allocation16 + $0x170] sm:$0xff]
    %v592 = vld [vmem:[#allocation16 + $0x178] sm:$0xff]
    %v593 = vld [vmem:[#allocation16 + $0x180] sm:$0xff]
    %v594 = vld [vmem:[#allocation16 + $0x188] sm:$0xff]
    %v595 = vld [vmem:[#allocation16 + $0x190] sm:$0xff]
    %v596 = vld [vmem:[#allocation16 + $0x198] sm:$0xff]
    %v597 = vld [vmem:[#allocation16 + $0x1a0] sm:$0xff]
    %v598 = vld [vmem:[#allocation16 + $0x1a8] sm:$0xff]
    %v599 = vld [vmem:[#allocation16 + $0x1b0] sm:$0xff]
    %v600 = vld [vmem:[#allocation16 + $0x1b8] sm:$0xff]
    %v601 = vld [vmem:[#allocation16 + $0x1c0] sm:$0xff]
    %v602 = vld [vmem:[#allocation16 + $0x1c8] sm:$0xff]
    %v603 = vld [vmem:[#allocation16 + $0x1d0] sm:$0xff]
    %v604 = vld [vmem:[#allocation16 + $0x1d8] sm:$0xff]
    %v605 = vld [vmem:[#allocation16 + $0x1e0] sm:$0xff]
    %v606 = vld [vmem:[#allocation16 + $0x1e8] sm:$0xff]
    %v607 = vld [vmem:[#allocation16 + $0x1f0] sm:$0xff]
    %v608 = vld [vmem:[#allocation16 + $0x1f8] sm:$0xff]
    %v609 = vld [vmem:[#allocation18] sm:$0xf]
    %v611 = vlaneseq
    %v612 = vshrl.u32 %v611, 7
    %v613 = vsub.s32 0, %v612
    %v614 = vrot.slane %v609, %v613
    %v615 = vlaneseq
    %v616 = vshrl.u32 %v615, 7
    %v617 = vsub.s32 1, %v616
    %v618 = vrot.slane %v609, %v617
    %v619 = vlaneseq
    %v620 = vshrl.u32 %v619, 7
    %v621 = vsub.s32 2, %v620
    %v622 = vrot.slane %v609, %v621
    %v623 = vlaneseq
    %v624 = vshrl.u32 %v623, 7
    %v625 = vsub.s32 3, %v624
    %v626 = vrot.slane %v609, %v625
    %v695 = vunpack.c.l.b16 %v545
    %v696 = vunpack.c.h.b16 %v545
    %v697 = vunpack.c.l.b16 %v546
    %v698 = vunpack.c.h.b16 %v546
    %v699 = vunpack.c.l.b16 %v547
    %v700 = vunpack.c.h.b16 %v547
    %v701 = vunpack.c.l.b16 %v548
    %v702 = vunpack.c.h.b16 %v548
    %v703 = vunpack.c.l.b16 %v549
    %v704 = vunpack.c.h.b16 %v549
    %v705 = vunpack.c.l.b16 %v550
    %v706 = vunpack.c.h.b16 %v550
    %v707 = vunpack.c.l.b16 %v551
    %v708 = vunpack.c.h.b16 %v551
    %v709 = vunpack.c.l.b16 %v552
    %v710 = vunpack.c.h.b16 %v552
    %v711 = vunpack.c.l.b16 %v553
    %v712 = vunpack.c.h.b16 %v553
    %v713 = vunpack.c.l.b16 %v554
    %v714 = vunpack.c.h.b16 %v554
    %v715 = vunpack.c.l.b16 %v555
    %v716 = vunpack.c.h.b16 %v555
    %v717 = vunpack.c.l.b16 %v556
    %v718 = vunpack.c.h.b16 %v556
    %v719 = vunpack.c.l.b16 %v557
    %v720 = vunpack.c.h.b16 %v557
    %v721 = vunpack.c.l.b16 %v558
    %v722 = vunpack.c.h.b16 %v558
    %v723 = vunpack.c.l.b16 %v559
    %v724 = vunpack.c.h.b16 %v559
    %v725 = vunpack.c.l.b16 %v560
    %v726 = vunpack.c.h.b16 %v560
    %v727 = vunpack.c.l.b16 %v561
    %v728 = vunpack.c.h.b16 %v561
    %v729 = vunpack.c.l.b16 %v562
    %v730 = vunpack.c.h.b16 %v562
    %v731 = vunpack.c.l.b16 %v563
    %v732 = vunpack.c.h.b16 %v563
    %v733 = vunpack.c.l.b16 %v564
    %v734 = vunpack.c.h.b16 %v564
    %v735 = vunpack.c.l.b16 %v565
    %v736 = vunpack.c.h.b16 %v565
    %v737 = vunpack.c.l.b16 %v566
    %v738 = vunpack.c.h.b16 %v566
    %v739 = vunpack.c.l.b16 %v567
    %v740 = vunpack.c.h.b16 %v567
    %v741 = vunpack.c.l.b16 %v568
    %v742 = vunpack.c.h.b16 %v568
    %v743 = vunpack.c.l.b16 %v569
    %v744 = vunpack.c.h.b16 %v569
    %v745 = vunpack.c.l.b16 %v570
    %v746 = vunpack.c.h.b16 %v570
    %v747 = vunpack.c.l.b16 %v571
    %v748 = vunpack.c.h.b16 %v571
    %v749 = vunpack.c.l.b16 %v572
    %v750 = vunpack.c.h.b16 %v572
    %v751 = vunpack.c.l.b16 %v573
    %v752 = vunpack.c.h.b16 %v573
    %v753 = vunpack.c.l.b16 %v574
    %v754 = vunpack.c.h.b16 %v574
    %v755 = vunpack.c.l.b16 %v575
    %v756 = vunpack.c.h.b16 %v575
    %v757 = vunpack.c.l.b16 %v576
    %v758 = vunpack.c.h.b16 %v576
    %v759 = vunpack.c.l.b16 %v577
    %v760 = vunpack.c.h.b16 %v577
    %v761 = vunpack.c.l.b16 %v578
    %v762 = vunpack.c.h.b16 %v578
    %v763 = vunpack.c.l.b16 %v579
    %v764 = vunpack.c.h.b16 %v579
    %v765 = vunpack.c.l.b16 %v580
    %v766 = vunpack.c.h.b16 %v580
    %v767 = vunpack.c.l.b16 %v581
    %v768 = vunpack.c.h.b16 %v581
    %v769 = vunpack.c.l.b16 %v582
    %v770 = vunpack.c.h.b16 %v582
    %v771 = vunpack.c.l.b16 %v583
    %v772 = vunpack.c.h.b16 %v583
    %v773 = vunpack.c.l.b16 %v584
    %v774 = vunpack.c.h.b16 %v584
    %v775 = vunpack.c.l.b16 %v585
    %v776 = vunpack.c.h.b16 %v585
    %v777 = vunpack.c.l.b16 %v586
    %v778 = vunpack.c.h.b16 %v586
    %v779 = vunpack.c.l.b16 %v587
    %v780 = vunpack.c.h.b16 %v587
    %v781 = vunpack.c.l.b16 %v588
    %v782 = vunpack.c.h.b16 %v588
    %v783 = vunpack.c.l.b16 %v589
    %v784 = vunpack.c.h.b16 %v589
    %v785 = vunpack.c.l.b16 %v590
    %v786 = vunpack.c.h.b16 %v590
    %v787 = vunpack.c.l.b16 %v591
    %v788 = vunpack.c.h.b16 %v591
    %v789 = vunpack.c.l.b16 %v592
    %v790 = vunpack.c.h.b16 %v592
    %v791 = vunpack.c.l.b16 %v593
    %v792 = vunpack.c.h.b16 %v593
    %v793 = vunpack.c.l.b16 %v594
    %v794 = vunpack.c.h.b16 %v594
    %v795 = vunpack.c.l.b16 %v595
    %v796 = vunpack.c.h.b16 %v595
    %v797 = vunpack.c.l.b16 %v596
    %v798 = vunpack.c.h.b16 %v596
    %v799 = vunpack.c.l.b16 %v597
    %v800 = vunpack.c.h.b16 %v597
    %v801 = vunpack.c.l.b16 %v598
    %v802 = vunpack.c.h.b16 %v598
    %v803 = vunpack.c.l.b16 %v599
    %v804 = vunpack.c.h.b16 %v599
    %v805 = vunpack.c.l.b16 %v600
    %v806 = vunpack.c.h.b16 %v600
    %v807 = vunpack.c.l.b16 %v601
    %v808 = vunpack.c.h.b16 %v601
    %v809 = vunpack.c.l.b16 %v602
    %v810 = vunpack.c.h.b16 %v602
    %v811 = vunpack.c.l.b16 %v603
    %v812 = vunpack.c.h.b16 %v603
    %v813 = vunpack.c.l.b16 %v604
    %v814 = vunpack.c.h.b16 %v604
    %v815 = vunpack.c.l.b16 %v605
    %v816 = vunpack.c.h.b16 %v605
    %v817 = vunpack.c.l.b16 %v606
    %v818 = vunpack.c.h.b16 %v606
    %v819 = vunpack.c.l.b16 %v607
    %v820 = vunpack.c.h.b16 %v607
    %v821 = vunpack.c.l.b16 %v608
    %v822 = vunpack.c.h.b16 %v608
    %v823 = vpack.c.b16 %v699, %v695
    %v824 = vpack.c.b16 %v700, %v696
    %v825 = vpack.c.b16 %v701, %v697
    %v826 = vpack.c.b16 %v702, %v698
    %v827 = vpack.c.b16 %v707, %v703
    %v828 = vpack.c.b16 %v708, %v704
    %v829 = vpack.c.b16 %v709, %v705
    %v830 = vpack.c.b16 %v710, %v706
    %v831 = vpack.c.b16 %v715, %v711
    %v832 = vpack.c.b16 %v716, %v712
    %v833 = vpack.c.b16 %v717, %v713
    %v834 = vpack.c.b16 %v718, %v714
    %v835 = vpack.c.b16 %v723, %v719
    %v836 = vpack.c.b16 %v724, %v720
    %v837 = vpack.c.b16 %v725, %v721
    %v838 = vpack.c.b16 %v726, %v722
    %v839 = vpack.c.b16 %v731, %v727
    %v840 = vpack.c.b16 %v732, %v728
    %v841 = vpack.c.b16 %v733, %v729
    %v842 = vpack.c.b16 %v734, %v730
    %v843 = vpack.c.b16 %v739, %v735
    %v844 = vpack.c.b16 %v740, %v736
    %v845 = vpack.c.b16 %v741, %v737
    %v846 = vpack.c.b16 %v742, %v738
    %v847 = vpack.c.b16 %v747, %v743
    %v848 = vpack.c.b16 %v748, %v744
    %v849 = vpack.c.b16 %v749, %v745
    %v850 = vpack.c.b16 %v750, %v746
    %v851 = vpack.c.b16 %v755, %v751
    %v852 = vpack.c.b16 %v756, %v752
    %v853 = vpack.c.b16 %v757, %v753
    %v854 = vpack.c.b16 %v758, %v754
    %v855 = vpack.c.b16 %v763, %v759
    %v856 = vpack.c.b16 %v764, %v760
    %v857 = vpack.c.b16 %v765, %v761
    %v858 = vpack.c.b16 %v766, %v762
    %v859 = vpack.c.b16 %v771, %v767
    %v860 = vpack.c.b16 %v772, %v768
    %v861 = vpack.c.b16 %v773, %v769
    %v862 = vpack.c.b16 %v774, %v770
    %v863 = vpack.c.b16 %v779, %v775
    %v864 = vpack.c.b16 %v780, %v776
    %v865 = vpack.c.b16 %v781, %v777
    %v866 = vpack.c.b16 %v782, %v778
    %v867 = vpack.c.b16 %v787, %v783
    %v868 = vpack.c.b16 %v788, %v784
    %v869 = vpack.c.b16 %v789, %v785
    %v870 = vpack.c.b16 %v790, %v786
    %v871 = vpack.c.b16 %v795, %v791
    %v872 = vpack.c.b16 %v796, %v792
    %v873 = vpack.c.b16 %v797, %v793
    %v874 = vpack.c.b16 %v798, %v794
    %v875 = vpack.c.b16 %v803, %v799
    %v876 = vpack.c.b16 %v804, %v800
    %v877 = vpack.c.b16 %v805, %v801
    %v878 = vpack.c.b16 %v806, %v802
    %v879 = vpack.c.b16 %v811, %v807
    %v880 = vpack.c.b16 %v812, %v808
    %v881 = vpack.c.b16 %v813, %v809
    %v882 = vpack.c.b16 %v814, %v810
    %v883 = vpack.c.b16 %v819, %v815
    %v884 = vpack.c.b16 %v820, %v816
    %v885 = vpack.c.b16 %v821, %v817
    %v886 = vpack.c.b16 %v822, %v818
    %951 = vmatprep.subr.bf16.mxu0 %v824
    %952 = vmatpush1.bf16.msra.mxu0 %v823
    %953 = vmatprep.subr.bf16.mxu0 %v828
    %954 = vmatpush1.bf16.msra.mxu0 %v827
    %955 = vmatprep.subr.bf16.mxu0 %v832
    %956 = vmatpush1.bf16.msra.mxu0 %v831
    %957 = vmatprep.subr.bf16.mxu0 %v836
    %958 = vmatpush1.bf16.msra.mxu0 %v835
    %959 = vmatprep.subr.bf16.mxu0 %v840
    %960 = vmatpush1.bf16.msra.mxu0 %v839
    %961 = vmatprep.subr.bf16.mxu0 %v844
    %962 = vmatpush1.bf16.msra.mxu0 %v843
    %963 = vmatprep.subr.bf16.mxu0 %v848
    %964 = vmatpush1.bf16.msra.mxu0 %v847
    %965 = vmatprep.subr.bf16.mxu0 %v852
    %966 = vmatpush1.bf16.msra.mxu0 %v851
    %967 = vmatprep.subr.bf16.mxu0 %v856
    %968 = vmatpush1.bf16.msra.mxu0 %v855
    %969 = vmatprep.subr.bf16.mxu0 %v860
    %970 = vmatpush1.bf16.msra.mxu0 %v859
    %971 = vmatprep.subr.bf16.mxu0 %v864
    %972 = vmatpush1.bf16.msra.mxu0 %v863
    %973 = vmatprep.subr.bf16.mxu0 %v868
    %974 = vmatpush1.bf16.msra.mxu0 %v867
    %975 = vmatprep.subr.bf16.mxu0 %v872
    %976 = vmatpush1.bf16.msra.mxu0 %v871
    %977 = vmatprep.subr.bf16.mxu0 %v876
    %978 = vmatpush1.bf16.msra.mxu0 %v875
    %979 = vmatprep.subr.bf16.mxu0 %v880
    %980 = vmatpush1.bf16.msra.mxu0 %v879
    %981 = vmatprep.subr.bf16.mxu0 %v884
    %982 = vmatpush1.bf16.msra.mxu0 %v883
    %983 = vmatprep.mubr.bf16.mxu0 %v544
    %984 = vmatmul.mubr.bf16.gmra.mrb[0].mxu0 %v543
    %v985 = vpop.f32.mrb[0].mxu0
    %v986 = vadd.f32 %v614, %v985
    %v987 = vpop.f32.mrb[0].mxu0
    %v988 = vadd.f32 %v618, %v987
    %v989 = vpop.f32.mrb[0].mxu0
    %v990 = vpop.f32.mrb[0].mxu0
    %991 = vdwg.mxu0
    %992 = vmatprep.subr.bf16.mxu0 %v826
    %993 = vmatpush1.bf16.msra.mxu0 %v825
    %994 = vmatprep.subr.bf16.mxu0 %v830
    %995 = vmatpush1.bf16.msra.mxu0 %v829
    %996 = vmatprep.subr.bf16.mxu0 %v834
    %997 = vmatpush1.bf16.msra.mxu0 %v833
    %998 = vmatprep.subr.bf16.mxu0 %v838
    %999 = vmatpush1.bf16.msra.mxu0 %v837
    %1000 = vmatprep.subr.bf16.mxu0 %v842
    %1001 = vmatpush1.bf16.msra.mxu0 %v841
    %1002 = vmatprep.subr.bf16.mxu0 %v846
    %1003 = vmatpush1.bf16.msra.mxu0 %v845
    %1004 = vmatprep.subr.bf16.mxu0 %v850
    %1005 = vmatpush1.bf16.msra.mxu0 %v849
    %1006 = vmatprep.subr.bf16.mxu0 %v854
    %1007 = vmatpush1.bf16.msra.mxu0 %v853
    %1008 = vmatprep.subr.bf16.mxu0 %v858
    %1009 = vmatpush1.bf16.msra.mxu0 %v857
    %1010 = vmatprep.subr.bf16.mxu0 %v862
    %1011 = vmatpush1.bf16.msra.mxu0 %v861
    %1012 = vmatprep.subr.bf16.mxu0 %v866
    %1013 = vmatpush1.bf16.msra.mxu0 %v865
    %1014 = vmatprep.subr.bf16.mxu0 %v870
    %1015 = vmatpush1.bf16.msra.mxu0 %v869
    %1016 = vmatprep.subr.bf16.mxu0 %v874
    %1017 = vmatpush1.bf16.msra.mxu0 %v873
    %1018 = vmatprep.subr.bf16.mxu0 %v878
    %1019 = vmatpush1.bf16.msra.mxu0 %v877
    %1020 = vmatprep.subr.bf16.mxu0 %v882
    %1021 = vmatpush1.bf16.msra.mxu0 %v881
    %1022 = vmatprep.subr.bf16.mxu0 %v886
    %1023 = vmatpush1.bf16.msra.mxu0 %v885
    %1024 = vmatprep.mubr.bf16.mxu0 %v544
    %1025 = vmatmul.mubr.bf16.gmra.mrb[0].mxu0 %v543
    %v1026 = vpop.f32.mrb[0].mxu0
    %v1027 = vadd.f32 %v622, %v1026
    %v1028 = vpop.f32.mrb[0].mxu0
    %v1029 = vadd.f32 %v626, %v1028
    %v1030 = vpop.f32.mrb[0].mxu0
    %v1031 = vpop.f32.mrb[0].mxu0
    %1032 = vdwg.mxu0
    %v1033 = vld [vmem:[#allocation19] sm:$0xf]
    %v1034 = vld [vmem:[#allocation21] sm:$0xf]
    %v1035 = vrot.slane %v986, 4
    %v1036 = vadd.f32 %v986, %v1035
    %v1037 = vrot.slane %v1036, 2
    %v1038 = vadd.f32 %v1036, %v1037
    %v1039 = vrot.slane %v1038, 1
    %v1040 = vadd.f32 %v1038, %v1039
    %v1041 = vrot.slane %v988, 4
    %v1042 = vadd.f32 %v988, %v1041
    %v1043 = vrot.slane %v1042, 2
    %v1044 = vadd.f32 %v1042, %v1043
    %v1045 = vrot.slane %v1044, 1
    %v1046 = vadd.f32 %v1044, %v1045
    %v1047 = vrot.slane %v1027, 4
    %v1048 = vadd.f32 %v1027, %v1047
    %v1049 = vrot.slane %v1048, 2
    %v1050 = vadd.f32 %v1048, %v1049
    %v1051 = vrot.slane %v1050, 1
    %v1052 = vadd.f32 %v1050, %v1051
    %v1053 = vrot.slane %v1029, 4
    %v1054 = vadd.f32 %v1029, %v1053
    %v1055 = vrot.slane %v1054, 2
    %v1056 = vadd.f32 %v1054, %v1055
    %v1057 = vrot.slane %v1056, 1
    %v1058 = vadd.f32 %v1056, %v1057
    %v1059 = vmul.f32 %v986, %v986
    %v1060 = vmul.f32 %v988, %v988
    %v1061 = vmul.f32 %v1027, %v1027
    %v1062 = vmul.f32 %v1029, %v1029
    %v1063 = vrot.slane %v1059, 4
    %v1064 = vadd.f32 %v1059, %v1063
    %v1065 = vrot.slane %v1064, 2
    %v1066 = vadd.f32 %v1064, %v1065
    %v1067 = vrot.slane %v1066, 1
    %v1068 = vadd.f32 %v1066, %v1067
    %v1069 = vrot.slane %v1060, 4
    %v1070 = vadd.f32 %v1060, %v1069
    %v1071 = vrot.slane %v1070, 2
    %v1072 = vadd.f32 %v1070, %v1071
    %v1073 = vrot.slane %v1072, 1
    %v1074 = vadd.f32 %v1072, %v1073
    %v1075 = vrot.slane %v1061, 4
    %v1076 = vadd.f32 %v1061, %v1075
    %v1077 = vrot.slane %v1076, 2
    %v1078 = vadd.f32 %v1076, %v1077
    %v1079 = vrot.slane %v1078, 1
    %v1080 = vadd.f32 %v1078, %v1079
    %v1081 = vrot.slane %v1062, 4
    %v1082 = vadd.f32 %v1062, %v1081
    %v1083 = vrot.slane %v1082, 2
    %v1084 = vadd.f32 %v1082, %v1083
    %v1085 = vrot.slane %v1084, 1
    %v1086 = vadd.f32 %v1084, %v1085
    %v1087 = vmul.f32 %v1040, 0.125
    %v1088 = vmul.f32 %v1046, 0.125
    %v1089 = vmul.f32 %v1052, 0.125
    %v1090 = vmul.f32 %v1058, 0.125
    %v1091 = vmul.f32 %v1068, 0.125
    %v1092 = vmul.f32 %v1074, 0.125
    %v1093 = vmul.f32 %v1080, 0.125
    %v1094 = vmul.f32 %v1086, 0.125
    %v1095 = vmul.f32 %v1087, %v1087
    %v1096 = vmul.f32 %v1088, %v1088
    %v1097 = vmul.f32 %v1089, %v1089
    %v1098 = vmul.f32 %v1090, %v1090
    %v1099 = vsub.f32 %v1091, %v1095
    %v1100 = vsub.f32 %v1092, %v1096
    %v1101 = vsub.f32 %v1093, %v1097
    %v1102 = vsub.f32 %v1094, %v1098
    %v1103 = vsub.f32 %v986, %v1087
    %v1104 = vsub.f32 %v988, %v1088
    %v1105 = vsub.f32 %v1027, %v1089
    %v1106 = vsub.f32 %v1029, %v1090
    %v1107 = vadd.f32 %v1099, 0.8
    %v1108 = vadd.f32 %v1100, 0.8
    %v1109 = vadd.f32 %v1101, 0.8
    %v1110 = vadd.f32 %v1102, 0.8
    %v1111 = vrsqrt.pop %v1107
    %v1112 = vrsqrt.pop %v1108
    %v1113 = vrsqrt.pop %v1109
    %v1114 = vrsqrt.pop %v1110
    %v1115 = vmul.f32 %v1103, %v1111
    %v1116 = vmul.f32 %v1104, %v1112
    %v1117 = vmul.f32 %v1105, %v1113
    %v1118 = vmul.f32 %v1106, %v1114
    %v1120 = vlaneseq
    %v1121 = vshrl.u32 %v1120, 7
    %v1122 = vsub.s32 0, %v1121
    %v1123 = vrot.slane %v1033, %v1122
    %v1124 = vlaneseq
    %v1125 = vshrl.u32 %v1124, 7
    %v1126 = vsub.s32 1, %v1125
    %v1127 = vrot.slane %v1033, %v1126
    %v1128 = vlaneseq
    %v1129 = vshrl.u32 %v1128, 7
    %v1130 = vsub.s32 2, %v1129
    %v1131 = vrot.slane %v1033, %v1130
    %v1132 = vlaneseq
    %v1133 = vshrl.u32 %v1132, 7
    %v1134 = vsub.s32 3, %v1133
    %v1135 = vrot.slane %v1033, %v1134
    %v1140 = vmul.f32 %v1115, %v1123
    %v1141 = vmul.f32 %v1116, %v1127
    %v1142 = vmul.f32 %v1117, %v1131
    %v1143 = vmul.f32 %v1118, %v1135
    %v1145 = vlaneseq
    %v1146 = vshrl.u32 %v1145, 7
    %v1147 = vsub.s32 0, %v1146
    %v1148 = vrot.slane %v1034, %v1147
    %v1149 = vlaneseq
    %v1150 = vshrl.u32 %v1149, 7
    %v1151 = vsub.s32 1, %v1150
    %v1152 = vrot.slane %v1034, %v1151
    %v1153 = vlaneseq
    %v1154 = vshrl.u32 %v1153, 7
    %v1155 = vsub.s32 2, %v1154
    %v1156 = vrot.slane %v1034, %v1155
    %v1157 = vlaneseq
    %v1158 = vshrl.u32 %v1157, 7
    %v1159 = vsub.s32 3, %v1158
    %v1160 = vrot.slane %v1034, %v1159
    %v1165 = vadd.f32 %v1140, %v1148
    %v1166 = vadd.f32 %v1141, %v1152
    %v1167 = vadd.f32 %v1142, %v1156
    %v1168 = vadd.f32 %v1143, %v1160
    %vm1169 = vcmp.gt.f32.partialorder %v1165, 0.0
    %vm1170 = vcmp.gt.f32.partialorder %v1166, 0.0
    %vm1171 = vcmp.gt.f32.partialorder %v1167, 0.0
    %vm1172 = vcmp.gt.f32.partialorder %v1168, 0.0
    %v1173 = vmul.f32 %v1165, 0.2
    %v1174 = vmul.f32 %v1166, 0.2
    %v1175 = vmul.f32 %v1167, 0.2
    %v1176 = vmul.f32 %v1168, 0.2
    %v1177 = vsel %vm1169, %v1165, %v1173
    %v1178 = vsel %vm1170, %v1166, %v1174
    %v1179 = vsel %vm1171, %v1167, %v1175
    %v1180 = vsel %vm1172, %v1168, %v1176
    %1181 = vst [vmem:[%s13] sm:$0xff] %v1177
    %1182 = vst [vmem:[%s13 + $0x8] sm:$0xff] %v1178
    %1183 = vst [vmem:[%s13 + $0x10] sm:$0xff] %v1179
    %1184 = vst [vmem:[%s13 + $0x18] sm:$0xff] %v1180
    // Predicated region
    $region106: #{generator_forward.2} parent=1 // pred_check
      _
    $region107: #{generator_forward.2} parent=1 // pred_check_branch
      %1186 = sbr.rel (0) target = $region109
    $region108: #{generator_forward.2} parent=1 // pred_region
      _
    $region109: #{generator_forward.2} parent=1 // pred_fallthru
      _
    // Predicated region
    $region110: #{generator_forward.2} parent=1 // pred_check
      _
    $region111: #{generator_forward.2} parent=1 // pred_check_branch
      %1188 = sbr.rel (0) target = $region113
    $region112: #{generator_forward.2} parent=1 // pred_region
      _
    $region113: #{generator_forward.2} parent=1 // pred_fallthru
      _
    %1189 = vsyncpa [#allocation3], 1
    %1190 = vsyncpa [#allocation5], 1
    %1191 = vsyncpa [#allocation8], 1
    %1192 = vsyncpa [#allocation11], 1
    %1193 = vsyncpa [#allocation14], 1
    %1194 = vsyncpa [#allocation17], 1
    %1195 = vsyncpa [#allocation20], 1

</llo_original>
